<compile_context>
chip_gen: v5e
topology: v5e:2x2
jax: 0.10.0
libtpu: 0.0.40
codegen_flags: <defaults>
</compile_context>

<pallas_src>
import functools

import jax
import jax.numpy as jnp
from jax.experimental import pallas as pl
from jax.experimental.pallas import tpu as pltpu

# ---------------- model hyper-parameters (scaled-down, shape-consistent) -----
N       = 2      # batch
CIN     = 4      # Conv1d in-channels (fixed by module)
SEQLEN  = 71     # sequence_length
KSIZE   = 8      # conv_kernel_size (fixed by module)
POOL    = 4      # pool_kernel_size (fixed by module)
COUT    = 128    # conv out-channels (module uses 1000)
HIDDEN  = 256    # hidden width     (module uses 1024)
NGEN    = 32     # n_genomic_features
EPS     = 1e-5   # BatchNorm eps (PyTorch default)

LOUT = SEQLEN - (KSIZE - 1)      # 64   conv output length
POUT = LOUT // POOL              # 16   pooled length
FLAT = COUT * POUT               # 2048 flatten size actually produced
KC   = KSIZE * CIN               # 32   im2col feature width
NGP  = 128                       # lane-padded output width (>= NGEN)
MAX_NB = 256                     # cap on batch-tile rows (~10 MiB VMEM at 256)


# ------------------------------ Pallas kernel --------------------------------
def deepsea_kernel(nb, x_ref, wc_ref, bnc_ref, w1_ref, bnh_ref, w2_ref,
                   o_ref, fcin_ref):
    # x_ref:   (POOL*POUT*nb, KC) bf16  im2col rows; row = j*(POUT*nb)+p*nb+s
    #                                   (j: pool offset, p: pooled pos, s: sample)
    # wc_ref:  (KC, COUT)    bf16  conv weight, im2col layout
    # bnc_ref: (2, COUT)     f32   [conv-BN scale ; conv-BN shift (bias folded)]
    # w1_ref:  (FLAT, HIDDEN) bf16 fc1 weight, flat index = p*COUT + c
    # bnh_ref: (3, HIDDEN)   f32   [fc1-BN scale ; fc1-BN shift ; fc2 bias (padded)]
    # w2_ref:  (HIDDEN, NGP) bf16  fc2 weight (output lane-padded to 128)
    # o_ref:   (nb, NGP)     f32
    # fcin_ref:(nb, FLAT)    f32   VMEM scratch: pooled activations in fc1 layout
    pn = POUT * nb
    cs = bnc_ref[0:1, :]
    ct = bnc_ref[1:2, :]

    # ---- Conv1d (im2col matmul) + BatchNorm1d + ReLU + MaxPool1d(4, 4),
    #      fused per pool offset j: only one (pn, COUT) chunk + running max live.
    pooled = None
    for j in range(POOL):
        conv_j = jnp.dot(x_ref[j * pn:(j + 1) * pn, :], wc_ref[...],
                         preferred_element_type=jnp.float32)
        act_j = jnp.maximum(conv_j * cs + ct, 0.0)
        pooled = act_j if pooled is None else jnp.maximum(pooled, act_j)

    # Dropout(p=0.3): inference mode -> identity.

    # ---- Relayout pooled (pn, COUT) [row = p*nb + s] into the fc1 input
    #      layout (nb, FLAT) [flat = p*COUT + c] via 16 aligned 128-lane stores.
    for p in range(POUT):
        fcin_ref[:, p * COUT:(p + 1) * COUT] = pooled[p * nb:(p + 1) * nb, :]

    # ---- Linear(FLAT, HIDDEN) as a single K=2048 matmul, then BN + ReLU.
    h = jnp.dot(fcin_ref[...].astype(jnp.bfloat16), w1_ref[...],
                preferred_element_type=jnp.float32)
    h = jnp.maximum(h * bnh_ref[0:1, :] + bnh_ref[1:2, :], 0.0)

    # ---- Linear(HIDDEN, NGEN) + Sigmoid (output lane-padded to NGP=128).
    logits = jnp.dot(h.astype(jnp.bfloat16), w2_ref[...],
                     preferred_element_type=jnp.float32) + bnh_ref[2:3, :NGP]
    o_ref[...] = jax.nn.sigmoid(logits)


# ------------------------------ wrapper ---------------------------------------
def _batch_tiling(n):
    """Pick (nb, ntiles): nb a multiple of 8, nb <= MAX_NB, and ntiles >= 2
    whenever the padded batch allows it (v7x megacore)."""
    npad8 = -(-n // 8) * 8
    if npad8 <= 8:
        return 8, 1
    ntiles = max(2, -(-npad8 // MAX_NB))
    nb = -(-npad8 // ntiles)
    nb = -(-nb // 8) * 8
    ntiles = -(-npad8 // nb)
    return nb, ntiles


def deepsea_forward(x, P):
    """x: (N, CIN, SEQLEN) float32 (PyTorch NCW).  Returns (N, NGEN) float32."""
    n = x.shape[0]
    nb, ntiles = _batch_tiling(n)
    npad = nb * ntiles
    rows = POOL * POUT * nb                                # im2col rows / tile

    # ---- im2col + row reordering (cheap XLA prep; row = (tile, j, p, s))
    xt = jnp.transpose(x, (0, 2, 1))                       # (n, L, CIN)
    xt = jnp.pad(xt, ((0, npad - n), (0, 0), (0, 0)))      # pad batch
    xu = jnp.stack([xt[:, k:k + LOUT, :] for k in range(KSIZE)], axis=2)
    xu = xu.reshape(npad, LOUT, KC)                        # feature = k*CIN+ci
    xu = xu.reshape(ntiles, nb, POUT, POOL, KC).transpose(0, 3, 2, 1, 4)
    xu = xu.reshape(ntiles * rows, KC).astype(jnp.bfloat16)

    # conv weight (COUT, CIN, KSIZE) -> (KC, COUT), feature index = k*CIN + ci
    wc = jnp.transpose(P["conv_w"], (2, 1, 0)).reshape(KC, COUT).astype(jnp.bfloat16)

    # Fold conv bias + BatchNorm1d running stats into scale/shift, stacked.
    cs = P["bn1_g"] / jnp.sqrt(P["bn1_v"] + EPS)
    ct = P["bn1_b"] + cs * (P["conv_b"] - P["bn1_m"])
    bnc = jnp.stack([cs, ct], axis=0)                      # (2, COUT)

    # fc1 weight: torch layout (HIDDEN, FLAT), flat = c*POUT + p.
    # Re-order to (FLAT, HIDDEN) with flat = p*COUT + c (kernel pooled layout).
    w1 = jnp.transpose(P["fc1_w"].reshape(HIDDEN, COUT, POUT),
                       (2, 1, 0)).reshape(FLAT, HIDDEN).astype(jnp.bfloat16)

    # fc1-BN scale/shift + lane-padded fc2 bias, stacked into one operand.
    s1 = P["bn2_g"] / jnp.sqrt(P["bn2_v"] + EPS)
    t1 = P["bn2_b"] + s1 * (P["fc1_b"] - P["bn2_m"])
    b2 = jnp.zeros((HIDDEN,), jnp.float32).at[:NGEN].set(P["fc2_b"])
    bnh = jnp.stack([s1, t1, b2], axis=0)                  # (3, HIDDEN)

    # fc2 weight, lane-padded to NGP=128 output columns.
    w2 = jnp.zeros((HIDDEN, NGP), jnp.float32).at[:, :NGEN].set(P["fc2_w"].T)
    w2 = w2.astype(jnp.bfloat16)

    grid_spec = pltpu.PrefetchScalarGridSpec(
        num_scalar_prefetch=0,
        grid=(ntiles,),
        in_specs=[
            pl.BlockSpec((rows, KC), lambda i: (i, 0)),            # x (im2col)
            pl.BlockSpec((KC, COUT), lambda i: (0, 0)),            # conv w
            pl.BlockSpec((2, COUT), lambda i: (0, 0)),             # conv BN
            pl.BlockSpec((FLAT, HIDDEN), lambda i: (0, 0)),        # fc1 w
            pl.BlockSpec((3, HIDDEN), lambda i: (0, 0)),           # fc1 BN + b2
            pl.BlockSpec((HIDDEN, NGP), lambda i: (0, 0)),         # fc2 w
        ],
        out_specs=pl.BlockSpec((nb, NGP), lambda i: (i, 0)),
        scratch_shapes=[pltpu.VMEM((nb, FLAT), jnp.float32)],
    )

    out = pl.pallas_call(
        functools.partial(deepsea_kernel, nb),
        out_shape=jax.ShapeDtypeStruct((npad, NGP), jnp.float32),
        grid_spec=grid_spec,
        compiler_params=pltpu.CompilerParams(dimension_semantics=("parallel",)),
    )(xu, wc, bnc, w1, bnh, w2)

    return out[:n, :NGEN]


# ------------------------------ pure-JAX reference ----------------------------
def torch_reference(x, P):
    hi = jax.lax.Precision.HIGHEST
    conv = jax.lax.conv_general_dilated(
        x, P["conv_w"], window_strides=(1,), padding="VALID",
        dimension_numbers=("NCH", "OIH", "NCH"), precision=hi)
    conv = conv + P["conv_b"][None, :, None]
    bn = ((conv - P["bn1_m"][None, :, None])
          / jnp.sqrt(P["bn1_v"][None, :, None] + EPS)
          * P["bn1_g"][None, :, None] + P["bn1_b"][None, :, None])
    r = jnp.maximum(bn, 0.0)
    n = x.shape[0]
    pooled = r.reshape(n, COUT, POUT, POOL).max(axis=-1)
    flat = pooled.reshape(n, FLAT)
    y1 = jnp.dot(flat, P["fc1_w"].T, precision=hi) + P["fc1_b"]
    y1 = (y1 - P["bn2_m"]) / jnp.sqrt(P["bn2_v"] + EPS) * P["bn2_g"] + P["bn2_b"]
    y1 = jnp.maximum(y1, 0.0)
    y2 = jnp.dot(y1, P["fc2_w"].T, precision=hi) + P["fc2_b"]
    return jax.nn.sigmoid(y2)


# ------------------------------ main ------------------------------------------
if __name__ == "__main__":
    key = jax.random.PRNGKey(0)
    ks = jax.random.split(key, 16)

    def u(k, shape, s):
        return jax.random.uniform(k, shape, jnp.float32, minval=-s, maxval=s)

    P = {
        # Conv1d(4, COUT, 8)
        "conv_w": u(ks[0], (COUT, CIN, KSIZE), 1.0 / (CIN * KSIZE) ** 0.5),
        "conv_b": u(ks[1], (COUT,), 1.0 / (CIN * KSIZE) ** 0.5),
        # BatchNorm1d(COUT) running stats / affine
        "bn1_g": jax.random.uniform(ks[2], (COUT,), jnp.float32, 0.5, 1.5),
        "bn1_b": 0.1 * jax.random.normal(ks[3], (COUT,), jnp.float32),
        "bn1_m": 0.1 * jax.random.normal(ks[4], (COUT,), jnp.float32),
        "bn1_v": jax.random.uniform(ks[5], (COUT,), jnp.float32, 0.5, 1.5),
        # Linear(FLAT, HIDDEN)
        "fc1_w": u(ks[6], (HIDDEN, FLAT), 1.0 / FLAT ** 0.5),
        "fc1_b": u(ks[7], (HIDDEN,), 1.0 / FLAT ** 0.5),
        # BatchNorm1d(HIDDEN)
        "bn2_g": jax.random.uniform(ks[8], (HIDDEN,), jnp.float32, 0.5, 1.5),
        "bn2_b": 0.1 * jax.random.normal(ks[9], (HIDDEN,), jnp.float32),
        "bn2_m": 0.1 * jax.random.normal(ks[10], (HIDDEN,), jnp.float32),
        "bn2_v": jax.random.uniform(ks[11], (HIDDEN,), jnp.float32, 0.5, 1.5),
        # Linear(HIDDEN, NGEN)
        "fc2_w": u(ks[12], (NGEN, HIDDEN), 1.0 / HIDDEN ** 0.5),
        "fc2_b": u(ks[13], (NGEN,), 1.0 / HIDDEN ** 0.5),
    }

    x = jax.random.normal(ks[14], (N, CIN, SEQLEN), jnp.float32)

    out = deepsea_forward(x, P)
    out = jax.block_until_ready(out)

    ref = torch_reference(x, P)
    assert out.shape == (N, NGEN), out.shape
    assert bool(jnp.all(jnp.isfinite(out)))
    # bf16 MXU operands with f32 accumulation: observed error is O(1e-3) on
    # sigmoid outputs; 1e-2 tolerance still catches any structural mistake.
    assert bool(jnp.allclose(out, ref, atol=1e-2, rtol=1e-2)), (
        "max abs err = %g" % float(jnp.max(jnp.abs(out - ref))))

    print("KERNEL_OK")
</pallas_src>

<mosaic_0001>
module attributes {stable_mosaic.version = 11 : i64} {
  func.func @deepsea_kernel(%arg0: i32, %arg1: memref<512x32xbf16, #tpu.memory_space<vmem>>, %arg2: memref<32x128xbf16, #tpu.memory_space<vmem>>, %arg3: memref<2x128xf32, #tpu.memory_space<vmem>>, %arg4: memref<2048x256xbf16, #tpu.memory_space<vmem>>, %arg5: memref<3x256xf32, #tpu.memory_space<vmem>>, %arg6: memref<256x128xbf16, #tpu.memory_space<vmem>>, %arg7: memref<8x128xf32, #tpu.memory_space<vmem>>, %arg8: memref<8x2048xf32, #tpu.memory_space<vmem>>) attributes {dimension_semantics = [#tpu.dimension_semantics<parallel>], iteration_bounds = array<i64: 1>, scalar_prefetch = 0 : i64, scratch_operands = 1 : i64, tpu.core_type = #tpu.core_type<tc>, window_params = [{transform_indices = @transform_0, window_bounds = array<i64: 512, 32>}, {pipeline_mode = #tpu.pipeline_mode<synchronous>, transform_indices = @transform_1, window_bounds = array<i64: 32, 128>}, {pipeline_mode = #tpu.pipeline_mode<synchronous>, transform_indices = @transform_2, window_bounds = array<i64: 2, 128>}, {pipeline_mode = #tpu.pipeline_mode<synchronous>, transform_indices = @transform_3, window_bounds = array<i64: 2048, 256>}, {pipeline_mode = #tpu.pipeline_mode<synchronous>, transform_indices = @transform_4, window_bounds = array<i64: 3, 256>}, {pipeline_mode = #tpu.pipeline_mode<synchronous>, transform_indices = @transform_5, window_bounds = array<i64: 256, 128>}, {transform_indices = @transform_6, window_bounds = array<i64: 8, 128>}]} {
    %c0 = arith.constant 0 : index
    %c0_0 = arith.constant 0 : index
    %0 = vector.load %arg3[%c0, %c0_0] : memref<2x128xf32, #tpu.memory_space<vmem>>, vector<1x128xf32>
    %c1 = arith.constant 1 : index
    %c0_1 = arith.constant 0 : index
    %1 = vector.load %arg3[%c1, %c0_1] : memref<2x128xf32, #tpu.memory_space<vmem>>, vector<1x128xf32>
    %c0_2 = arith.constant 0 : index
    %c0_3 = arith.constant 0 : index
    %2 = vector.load %arg1[%c0_2, %c0_3] : memref<512x32xbf16, #tpu.memory_space<vmem>>, vector<128x32xbf16>
    %c0_4 = arith.constant 0 : index
    %c0_5 = arith.constant 0 : index
    %3 = vector.load %arg2[%c0_4, %c0_5] : memref<32x128xbf16, #tpu.memory_space<vmem>>, vector<32x128xbf16>
    %cst = arith.constant dense<0.000000e+00> : vector<128x128xf32>
    %4 = tpu.matmul %2, %3, %cst {dimension_numbers = #tpu.dot_dimension_numbers<[1], [0], [0], [1], [0, 0, 1, 1], [], []>} : vector<128x32xbf16>, vector<32x128xbf16>, vector<128x128xf32> -> vector<128x128xf32>
    %5 = vector.broadcast %0 : vector<1x128xf32> to vector<128x128xf32>
    %6 = arith.mulf %4, %5 : vector<128x128xf32>
    %7 = vector.broadcast %1 : vector<1x128xf32> to vector<128x128xf32>
    %8 = arith.addf %6, %7 : vector<128x128xf32>
    %cst_6 = arith.constant 0.000000e+00 : f32
    %9 = vector.broadcast %cst_6 : f32 to vector<128x128xf32>
    %10 = arith.maximumf %8, %9 : vector<128x128xf32>
    %c128 = arith.constant 128 : index
    %c0_7 = arith.constant 0 : index
    %11 = vector.load %arg1[%c128, %c0_7] : memref<512x32xbf16, #tpu.memory_space<vmem>>, vector<128x32xbf16>
    %c0_8 = arith.constant 0 : index
    %c0_9 = arith.constant 0 : index
    %12 = vector.load %arg2[%c0_8, %c0_9] : memref<32x128xbf16, #tpu.memory_space<vmem>>, vector<32x128xbf16>
    %cst_10 = arith.constant dense<0.000000e+00> : vector<128x128xf32>
    %13 = tpu.matmul %11, %12, %cst_10 {dimension_numbers = #tpu.dot_dimension_numbers<[1], [0], [0], [1], [0, 0, 1, 1], [], []>} : vector<128x32xbf16>, vector<32x128xbf16>, vector<128x128xf32> -> vector<128x128xf32>
    %14 = vector.broadcast %0 : vector<1x128xf32> to vector<128x128xf32>
    %15 = arith.mulf %13, %14 : vector<128x128xf32>
    %16 = vector.broadcast %1 : vector<1x128xf32> to vector<128x128xf32>
    %17 = arith.addf %15, %16 : vector<128x128xf32>
    %cst_11 = arith.constant 0.000000e+00 : f32
    %18 = vector.broadcast %cst_11 : f32 to vector<128x128xf32>
    %19 = arith.maximumf %17, %18 : vector<128x128xf32>
    %20 = arith.maximumf %10, %19 : vector<128x128xf32>
    %c256 = arith.constant 256 : index
    %c0_12 = arith.constant 0 : index
    %21 = vector.load %arg1[%c256, %c0_12] : memref<512x32xbf16, #tpu.memory_space<vmem>>, vector<128x32xbf16>
    %c0_13 = arith.constant 0 : index
    %c0_14 = arith.constant 0 : index
    %22 = vector.load %arg2[%c0_13, %c0_14] : memref<32x128xbf16, #tpu.memory_space<vmem>>, vector<32x128xbf16>
    %cst_15 = arith.constant dense<0.000000e+00> : vector<128x128xf32>
    %23 = tpu.matmul %21, %22, %cst_15 {dimension_numbers = #tpu.dot_dimension_numbers<[1], [0], [0], [1], [0, 0, 1, 1], [], []>} : vector<128x32xbf16>, vector<32x128xbf16>, vector<128x128xf32> -> vector<128x128xf32>
    %24 = vector.broadcast %0 : vector<1x128xf32> to vector<128x128xf32>
    %25 = arith.mulf %23, %24 : vector<128x128xf32>
    %26 = vector.broadcast %1 : vector<1x128xf32> to vector<128x128xf32>
    %27 = arith.addf %25, %26 : vector<128x128xf32>
    %cst_16 = arith.constant 0.000000e+00 : f32
    %28 = vector.broadcast %cst_16 : f32 to vector<128x128xf32>
    %29 = arith.maximumf %27, %28 : vector<128x128xf32>
    %30 = arith.maximumf %20, %29 : vector<128x128xf32>
    %c384 = arith.constant 384 : index
    %c0_17 = arith.constant 0 : index
    %31 = vector.load %arg1[%c384, %c0_17] : memref<512x32xbf16, #tpu.memory_space<vmem>>, vector<128x32xbf16>
    %c0_18 = arith.constant 0 : index
    %c0_19 = arith.constant 0 : index
    %32 = vector.load %arg2[%c0_18, %c0_19] : memref<32x128xbf16, #tpu.memory_space<vmem>>, vector<32x128xbf16>
    %cst_20 = arith.constant dense<0.000000e+00> : vector<128x128xf32>
    %33 = tpu.matmul %31, %32, %cst_20 {dimension_numbers = #tpu.dot_dimension_numbers<[1], [0], [0], [1], [0, 0, 1, 1], [], []>} : vector<128x32xbf16>, vector<32x128xbf16>, vector<128x128xf32> -> vector<128x128xf32>
    %34 = vector.broadcast %0 : vector<1x128xf32> to vector<128x128xf32>
    %35 = arith.mulf %33, %34 : vector<128x128xf32>
    %36 = vector.broadcast %1 : vector<1x128xf32> to vector<128x128xf32>
    %37 = arith.addf %35, %36 : vector<128x128xf32>
    %cst_21 = arith.constant 0.000000e+00 : f32
    %38 = vector.broadcast %cst_21 : f32 to vector<128x128xf32>
    %39 = arith.maximumf %37, %38 : vector<128x128xf32>
    %40 = arith.maximumf %30, %39 : vector<128x128xf32>
    %41 = vector.extract_strided_slice %40 {offsets = [0, 0], sizes = [8, 128], strides = [1, 1]} : vector<128x128xf32> to vector<8x128xf32>
    %c0_22 = arith.constant 0 : index
    %c0_23 = arith.constant 0 : index
    %42 = vector.load %arg8[%c0_22, %c0_23] : memref<8x2048xf32, #tpu.memory_space<vmem>>, vector<8x128xf32>
    tpu.vector_store %arg8[%c0_22, %c0_23], %41 {strides = array<i32>} : memref<8x2048xf32, #tpu.memory_space<vmem>>, vector<8x128xf32>,
    %43 = vector.extract_strided_slice %40 {offsets = [8, 0], sizes = [8, 128], strides = [1, 1]} : vector<128x128xf32> to vector<8x128xf32>
    %c0_24 = arith.constant 0 : index
    %c128_25 = arith.constant 128 : index
    %44 = vector.load %arg8[%c0_24, %c128_25] : memref<8x2048xf32, #tpu.memory_space<vmem>>, vector<8x128xf32>
    tpu.vector_store %arg8[%c0_24, %c128_25], %43 {strides = array<i32>} : memref<8x2048xf32, #tpu.memory_space<vmem>>, vector<8x128xf32>,
    %45 = vector.extract_strided_slice %40 {offsets = [16, 0], sizes = [8, 128], strides = [1, 1]} : vector<128x128xf32> to vector<8x128xf32>
    %c0_26 = arith.constant 0 : index
    %c256_27 = arith.constant 256 : index
    %46 = vector.load %arg8[%c0_26, %c256_27] : memref<8x2048xf32, #tpu.memory_space<vmem>>, vector<8x128xf32>
    tpu.vector_store %arg8[%c0_26, %c256_27], %45 {strides = array<i32>} : memref<8x2048xf32, #tpu.memory_space<vmem>>, vector<8x128xf32>,
    %47 = vector.extract_strided_slice %40 {offsets = [24, 0], sizes = [8, 128], strides = [1, 1]} : vector<128x128xf32> to vector<8x128xf32>
    %c0_28 = arith.constant 0 : index
    %c384_29 = arith.constant 384 : index
    %48 = vector.load %arg8[%c0_28, %c384_29] : memref<8x2048xf32, #tpu.memory_space<vmem>>, vector<8x128xf32>
    tpu.vector_store %arg8[%c0_28, %c384_29], %47 {strides = array<i32>} : memref<8x2048xf32, #tpu.memory_space<vmem>>, vector<8x128xf32>,
    %49 = vector.extract_strided_slice %40 {offsets = [32, 0], sizes = [8, 128], strides = [1, 1]} : vector<128x128xf32> to vector<8x128xf32>
    %c0_30 = arith.constant 0 : index
    %c512 = arith.constant 512 : index
    %50 = vector.load %arg8[%c0_30, %c512] : memref<8x2048xf32, #tpu.memory_space<vmem>>, vector<8x128xf32>
    tpu.vector_store %arg8[%c0_30, %c512], %49 {strides = array<i32>} : memref<8x2048xf32, #tpu.memory_space<vmem>>, vector<8x128xf32>,
    %51 = vector.extract_strided_slice %40 {offsets = [40, 0], sizes = [8, 128], strides = [1, 1]} : vector<128x128xf32> to vector<8x128xf32>
    %c0_31 = arith.constant 0 : index
    %c640 = arith.constant 640 : index
    %52 = vector.load %arg8[%c0_31, %c640] : memref<8x2048xf32, #tpu.memory_space<vmem>>, vector<8x128xf32>
    tpu.vector_store %arg8[%c0_31, %c640], %51 {strides = array<i32>} : memref<8x2048xf32, #tpu.memory_space<vmem>>, vector<8x128xf32>,
    %53 = vector.extract_strided_slice %40 {offsets = [48, 0], sizes = [8, 128], strides = [1, 1]} : vector<128x128xf32> to vector<8x128xf32>
    %c0_32 = arith.constant 0 : index
    %c768 = arith.constant 768 : index
    %54 = vector.load %arg8[%c0_32, %c768] : memref<8x2048xf32, #tpu.memory_space<vmem>>, vector<8x128xf32>
    tpu.vector_store %arg8[%c0_32, %c768], %53 {strides = array<i32>} : memref<8x2048xf32, #tpu.memory_space<vmem>>, vector<8x128xf32>,
    %55 = vector.extract_strided_slice %40 {offsets = [56, 0], sizes = [8, 128], strides = [1, 1]} : vector<128x128xf32> to vector<8x128xf32>
    %c0_33 = arith.constant 0 : index
    %c896 = arith.constant 896 : index
    %56 = vector.load %arg8[%c0_33, %c896] : memref<8x2048xf32, #tpu.memory_space<vmem>>, vector<8x128xf32>
    tpu.vector_store %arg8[%c0_33, %c896], %55 {strides = array<i32>} : memref<8x2048xf32, #tpu.memory_space<vmem>>, vector<8x128xf32>,
    %57 = vector.extract_strided_slice %40 {offsets = [64, 0], sizes = [8, 128], strides = [1, 1]} : vector<128x128xf32> to vector<8x128xf32>
    %c0_34 = arith.constant 0 : index
    %c1024 = arith.constant 1024 : index
    %58 = vector.load %arg8[%c0_34, %c1024] : memref<8x2048xf32, #tpu.memory_space<vmem>>, vector<8x128xf32>
    tpu.vector_store %arg8[%c0_34, %c1024], %57 {strides = array<i32>} : memref<8x2048xf32, #tpu.memory_space<vmem>>, vector<8x128xf32>,
    %59 = vector.extract_strided_slice %40 {offsets = [72, 0], sizes = [8, 128], strides = [1, 1]} : vector<128x128xf32> to vector<8x128xf32>
    %c0_35 = arith.constant 0 : index
    %c1152 = arith.constant 1152 : index
    %60 = vector.load %arg8[%c0_35, %c1152] : memref<8x2048xf32, #tpu.memory_space<vmem>>, vector<8x128xf32>
    tpu.vector_store %arg8[%c0_35, %c1152], %59 {strides = array<i32>} : memref<8x2048xf32, #tpu.memory_space<vmem>>, vector<8x128xf32>,
    %61 = vector.extract_strided_slice %40 {offsets = [80, 0], sizes = [8, 128], strides = [1, 1]} : vector<128x128xf32> to vector<8x128xf32>
    %c0_36 = arith.constant 0 : index
    %c1280 = arith.constant 1280 : index
    %62 = vector.load %arg8[%c0_36, %c1280] : memref<8x2048xf32, #tpu.memory_space<vmem>>, vector<8x128xf32>
    tpu.vector_store %arg8[%c0_36, %c1280], %61 {strides = array<i32>} : memref<8x2048xf32, #tpu.memory_space<vmem>>, vector<8x128xf32>,
    %63 = vector.extract_strided_slice %40 {offsets = [88, 0], sizes = [8, 128], strides = [1, 1]} : vector<128x128xf32> to vector<8x128xf32>
    %c0_37 = arith.constant 0 : index
    %c1408 = arith.constant 1408 : index
    %64 = vector.load %arg8[%c0_37, %c1408] : memref<8x2048xf32, #tpu.memory_space<vmem>>, vector<8x128xf32>
    tpu.vector_store %arg8[%c0_37, %c1408], %63 {strides = array<i32>} : memref<8x2048xf32, #tpu.memory_space<vmem>>, vector<8x128xf32>,
    %65 = vector.extract_strided_slice %40 {offsets = [96, 0], sizes = [8, 128], strides = [1, 1]} : vector<128x128xf32> to vector<8x128xf32>
    %c0_38 = arith.constant 0 : index
    %c1536 = arith.constant 1536 : index
    %66 = vector.load %arg8[%c0_38, %c1536] : memref<8x2048xf32, #tpu.memory_space<vmem>>, vector<8x128xf32>
    tpu.vector_store %arg8[%c0_38, %c1536], %65 {strides = array<i32>} : memref<8x2048xf32, #tpu.memory_space<vmem>>, vector<8x128xf32>,
    %67 = vector.extract_strided_slice %40 {offsets = [104, 0], sizes = [8, 128], strides = [1, 1]} : vector<128x128xf32> to vector<8x128xf32>
    %c0_39 = arith.constant 0 : index
    %c1664 = arith.constant 1664 : index
    %68 = vector.load %arg8[%c0_39, %c1664] : memref<8x2048xf32, #tpu.memory_space<vmem>>, vector<8x128xf32>
    tpu.vector_store %arg8[%c0_39, %c1664], %67 {strides = array<i32>} : memref<8x2048xf32, #tpu.memory_space<vmem>>, vector<8x128xf32>,
    %69 = vector.extract_strided_slice %40 {offsets = [112, 0], sizes = [8, 128], strides = [1, 1]} : vector<128x128xf32> to vector<8x128xf32>
    %c0_40 = arith.constant 0 : index
    %c1792 = arith.constant 1792 : index
    %70 = vector.load %arg8[%c0_40, %c1792] : memref<8x2048xf32, #tpu.memory_space<vmem>>, vector<8x128xf32>
    tpu.vector_store %arg8[%c0_40, %c1792], %69 {strides = array<i32>} : memref<8x2048xf32, #tpu.memory_space<vmem>>, vector<8x128xf32>,
    %71 = vector.extract_strided_slice %40 {offsets = [120, 0], sizes = [8, 128], strides = [1, 1]} : vector<128x128xf32> to vector<8x128xf32>
    %c0_41 = arith.constant 0 : index
    %c1920 = arith.constant 1920 : index
    %72 = vector.load %arg8[%c0_41, %c1920] : memref<8x2048xf32, #tpu.memory_space<vmem>>, vector<8x128xf32>
    tpu.vector_store %arg8[%c0_41, %c1920], %71 {strides = array<i32>} : memref<8x2048xf32, #tpu.memory_space<vmem>>, vector<8x128xf32>,
    %c0_42 = arith.constant 0 : index
    %c0_43 = arith.constant 0 : index
    %73 = vector.load %arg8[%c0_42, %c0_43] : memref<8x2048xf32, #tpu.memory_space<vmem>>, vector<8x2048xf32>
    %74 = arith.truncf %73 : vector<8x2048xf32> to vector<8x2048xbf16>
    %c0_44 = arith.constant 0 : index
    %c0_45 = arith.constant 0 : index
    %75 = vector.load %arg4[%c0_44, %c0_45] : memref<2048x256xbf16, #tpu.memory_space<vmem>>, vector<2048x256xbf16>
    %cst_46 = arith.constant dense<0.000000e+00> : vector<8x256xf32>
    %76 = tpu.matmul %74, %75, %cst_46 {dimension_numbers = #tpu.dot_dimension_numbers<[1], [0], [0], [1], [0, 0, 1, 1], [], []>} : vector<8x2048xbf16>, vector<2048x256xbf16>, vector<8x256xf32> -> vector<8x256xf32>
    %c0_47 = arith.constant 0 : index
    %c0_48 = arith.constant 0 : index
    %77 = vector.load %arg5[%c0_47, %c0_48] : memref<3x256xf32, #tpu.memory_space<vmem>>, vector<1x256xf32>
    %78 = vector.broadcast %77 : vector<1x256xf32> to vector<8x256xf32>
    %79 = arith.mulf %76, %78 : vector<8x256xf32>
    %c1_49 = arith.constant 1 : index
    %c0_50 = arith.constant 0 : index
    %80 = vector.load %arg5[%c1_49, %c0_50] : memref<3x256xf32, #tpu.memory_space<vmem>>, vector<1x256xf32>
    %81 = vector.broadcast %80 : vector<1x256xf32> to vector<8x256xf32>
    %82 = arith.addf %79, %81 : vector<8x256xf32>
    %cst_51 = arith.constant 0.000000e+00 : f32
    %83 = vector.broadcast %cst_51 : f32 to vector<8x256xf32>
    %84 = arith.maximumf %82, %83 : vector<8x256xf32>
    %85 = arith.truncf %84 : vector<8x256xf32> to vector<8x256xbf16>
    %c0_52 = arith.constant 0 : index
    %c0_53 = arith.constant 0 : index
    %86 = vector.load %arg6[%c0_52, %c0_53] : memref<256x128xbf16, #tpu.memory_space<vmem>>, vector<256x128xbf16>
    %cst_54 = arith.constant dense<0.000000e+00> : vector<8x128xf32>
    %87 = tpu.matmul %85, %86, %cst_54 {dimension_numbers = #tpu.dot_dimension_numbers<[1], [0], [0], [1], [0, 0, 1, 1], [], []>} : vector<8x256xbf16>, vector<256x128xbf16>, vector<8x128xf32> -> vector<8x128xf32>
    %c2 = arith.constant 2 : index
    %c0_55 = arith.constant 0 : index
    %88 = vector.load %arg5[%c2, %c0_55] : memref<3x256xf32, #tpu.memory_space<vmem>>, vector<1x128xf32>
    %89 = vector.broadcast %88 : vector<1x128xf32> to vector<8x128xf32>
    %90 = arith.addf %87, %89 : vector<8x128xf32>
    %91 = arith.negf %90 : vector<8x128xf32>
    %92 = math.exp %91 : vector<8x128xf32>
    %cst_56 = arith.constant 1.000000e+00 : f32
    %93 = vector.broadcast %cst_56 : f32 to vector<8x128xf32>
    %94 = arith.addf %93, %92 : vector<8x128xf32>
    %95 = arith.divf %93, %94 : vector<8x128xf32>
    %c0_57 = arith.constant 0 : index
    %c0_58 = arith.constant 0 : index
    %96 = vector.load %arg7[%c0_57, %c0_58] : memref<8x128xf32, #tpu.memory_space<vmem>>, vector<8x128xf32>
    tpu.vector_store %arg7[%c0_57, %c0_58], %95 {strides = array<i32>} : memref<8x128xf32, #tpu.memory_space<vmem>>, vector<8x128xf32>,
    return
  }
  func.func @transform_0(%arg0: i32) -> (i32, i32) {
    %c0_i32 = arith.constant 0 : i32
    %c0_i32_0 = arith.constant 0 : i32
    return %arg0, %c0_i32 : i32, i32
  }
  func.func @transform_1(%arg0: i32) -> (i32, i32) {
    %c0_i32 = arith.constant 0 : i32
    %c0_i32_0 = arith.constant 0 : i32
    %c0_i32_1 = arith.constant 0 : i32
    return %c0_i32, %c0_i32_0 : i32, i32
  }
  func.func @transform_2(%arg0: i32) -> (i32, i32) {
    %c0_i32 = arith.constant 0 : i32
    %c0_i32_0 = arith.constant 0 : i32
    %c0_i32_1 = arith.constant 0 : i32
    return %c0_i32, %c0_i32_0 : i32, i32
  }
  func.func @transform_3(%arg0: i32) -> (i32, i32) {
    %c0_i32 = arith.constant 0 : i32
    %c0_i32_0 = arith.constant 0 : i32
    %c0_i32_1 = arith.constant 0 : i32
    return %c0_i32, %c0_i32_0 : i32, i32
  }
  func.func @transform_4(%arg0: i32) -> (i32, i32) {
    %c0_i32 = arith.constant 0 : i32
    %c0_i32_0 = arith.constant 0 : i32
    %c0_i32_1 = arith.constant 0 : i32
    return %c0_i32, %c0_i32_0 : i32, i32
  }
  func.func @transform_5(%arg0: i32) -> (i32, i32) {
    %c0_i32 = arith.constant 0 : i32
    %c0_i32_0 = arith.constant 0 : i32
    %c0_i32_1 = arith.constant 0 : i32
    return %c0_i32, %c0_i32_0 : i32, i32
  }
  func.func @transform_6(%arg0: i32) -> (i32, i32) {
    %c0_i32 = arith.constant 0 : i32
    %c0_i32_0 = arith.constant 0 : i32
    return %arg0, %c0_i32 : i32, i32
  }
}

</mosaic_0001>

<llo_original>
// kernel: tpu_custom_call.1
$region0: #{tpu_custom_call.1}
  #allocation0 [shape = 'u32[]', space=smem, size = 0x4, offset = 0x4, fixed_abs, tag = 'smem constant byte address 0x4 - core index']
  #allocation1 [shape = 'u32[72,128]{1,0:T(1,128)}', space=vmem, size = 0x9000, scoped, tag = 'internal scratch']
  #allocation2 [shape = 'f32[8,2048]{1,0:T(8,128)}', space=vmem, size = 0x10000, scoped, tag = 'scratch operand']
  %s0 = inlined_call_operand.vmem [shape: bf16[512,32], index: 0, kind: input, shape index: {}]
  %s1 = inlined_call_operand.vmem [shape: bf16[32,128], index: 1, kind: input, shape index: {}]
  %s2 = inlined_call_operand.vmem [shape: f32[2,128], index: 2, kind: input, shape index: {}]
  %s3 = inlined_call_operand.hbm [shape: bf16[2048,256], index: 3, kind: input, shape index: {}]
  %s4 = inlined_call_operand.vmem [shape: f32[3,256], index: 4, kind: input, shape index: {}]
  %s5 = inlined_call_operand.vmem [shape: bf16[256,128], index: 5, kind: input, shape index: {}]
  %s6 = inlined_call_operand.hbm [shape: f32[8,128], index: 6, kind: output, shape index: {}]
  %s7 = sld [smem:[#allocation0]]
  $region38: #{tpu_custom_call.1} parent=0
    _
  %s9 = ssub.s32 1, %s7
  %s10 = scalar_select 0, %s9, %s7
  $region1: #{tpu_custom_call.1} parent=0
    #allocation3 [shape = 'u8[1048576]{0}', space=vmem, size = 0x100000, scoped, tag = 'input window, operand 3, single buffered']
    #allocation4 [shape = 's32[1]{0}', space=sflag, size = 0x4, scoped, tag = 'scoped memory for tpu_custom_call.1']
    #allocation5 [shape = 's32[1]{0}', space=sflag, size = 0x4, scoped, tag = 'scoped memory for tpu_custom_call.1']
    #allocation6 [shape = 'u8[4096]{0}', space=vmem, size = 0x1000, scoped, tag = 'output window, operand 0, single buffered']
    %11 = vsyncpa [#allocation4], 0
    %12 = vsyncpa [#allocation5], 0
    // Predicated region
    $region2: #{tpu_custom_call.1} parent=1 // pred_check
      _
    $region3: #{tpu_custom_call.1} parent=1 // pred_check_branch
      %14 = sbr.rel (0) target = $region5
    $region4: #{tpu_custom_call.1} parent=1 // pred_region
      _
    $region5: #{tpu_custom_call.1} parent=1 // pred_fallthru
      _
    // Predicated region
    $region6: #{tpu_custom_call.1} parent=1 // pred_check
      _
    $region7: #{tpu_custom_call.1} parent=1 // pred_check_branch
      %16 = sbr.rel (0) target = $region9
    $region8: #{tpu_custom_call.1} parent=1 // pred_region
      _
    $region9: #{tpu_custom_call.1} parent=1 // pred_fallthru
      _
    // Predicated region
    $region10: #{tpu_custom_call.1} parent=1 // pred_check
      _
    $region11: #{tpu_custom_call.1} parent=1 // pred_check_branch
      %18 = sbr.rel (0) target = $region13
    $region12: #{tpu_custom_call.1} parent=1 // pred_region
      _
    $region13: #{tpu_custom_call.1} parent=1 // pred_fallthru
      _
    // Predicated region
    $region14: #{tpu_custom_call.1} parent=1 // pred_check
      _
    $region15: #{tpu_custom_call.1} parent=1 // pred_check_branch
      %20 = sbr.rel (0) target = $region17
    $region16: #{tpu_custom_call.1} parent=1 // pred_region
      %22 = vsyncadd [#allocation4], 0
      %s23 = sshll.u32 %s3, 4
      %s24 = int_to_ptr.hbm [resolvable:$true] %s23
      %s25 = sshll.u32 [#allocation3], 4
      %s26 = int_to_ptr.vmem [resolvable:$true] %s25
      %31 = dma.hbm_to_vmem [thread:$0]  %s24, 32768, %s26, [#allocation4], 128, 128, 8
    $region17: #{tpu_custom_call.1} parent=1 // pred_fallthru
      _
    // Predicated region
    $region18: #{tpu_custom_call.1} parent=1 // pred_check
      _
    $region19: #{tpu_custom_call.1} parent=1 // pred_check_branch
      %33 = sbr.rel (0) target = $region21
    $region20: #{tpu_custom_call.1} parent=1 // pred_region
      _
    $region21: #{tpu_custom_call.1} parent=1 // pred_fallthru
      _
    // Predicated region
    $region22: #{tpu_custom_call.1} parent=1 // pred_check
      _
    $region23: #{tpu_custom_call.1} parent=1 // pred_check_branch
      %35 = sbr.rel (0) target = $region25
    $region24: #{tpu_custom_call.1} parent=1 // pred_region
      _
    $region25: #{tpu_custom_call.1} parent=1 // pred_fallthru
      _
    // Predicated region
    $region26: #{tpu_custom_call.1} parent=1 // pred_check
      _
    $region27: #{tpu_custom_call.1} parent=1 // pred_check_branch
      %37 = sbr.rel (0) target = $region29
    $region28: #{tpu_custom_call.1} parent=1 // pred_region
      %39 = dma.done [#allocation4], 32768
    $region29: #{tpu_custom_call.1} parent=1 // pred_fallthru
      _
    %v41 = vld [vmem:[%s2] sm:$0x1]
    %v42 = vld [vmem:[%s2 + $0x1] sm:$0x1]
    %v43 = vld [vmem:[%s0] sm:$0xf]
    %v44 = vld [vmem:[%s0 + $0x4] sm:$0xf]
    %v45 = vld [vmem:[%s0 + $0x8] sm:$0xf]
    %v46 = vld [vmem:[%s0 + $0xc] sm:$0xf]
    %v47 = vld [vmem:[%s0 + $0x10] sm:$0xf]
    %v48 = vld [vmem:[%s0 + $0x14] sm:$0xf]
    %v49 = vld [vmem:[%s0 + $0x18] sm:$0xf]
    %v50 = vld [vmem:[%s0 + $0x1c] sm:$0xf]
    %v51 = vld [vmem:[%s0 + $0x20] sm:$0xf]
    %v52 = vld [vmem:[%s0 + $0x24] sm:$0xf]
    %v53 = vld [vmem:[%s0 + $0x28] sm:$0xf]
    %v54 = vld [vmem:[%s0 + $0x2c] sm:$0xf]
    %v55 = vld [vmem:[%s0 + $0x30] sm:$0xf]
    %v56 = vld [vmem:[%s0 + $0x34] sm:$0xf]
    %v57 = vld [vmem:[%s0 + $0x38] sm:$0xf]
    %v58 = vld [vmem:[%s0 + $0x3c] sm:$0xf]
    %v59 = vld [vmem:[%s1] sm:$0xf]
    %v60 = vld [vmem:[%s1 + $0x4] sm:$0xf]
    %v61 = vld [vmem:[%s1 + $0x8] sm:$0xf]
    %v62 = vld [vmem:[%s1 + $0xc] sm:$0xf]
    %v79 = vunpack.c.l.b16 %v43
    %v80 = vunpack.c.l.b16 %v44
    %v81 = vunpack.c.l.b16 %v45
    %v82 = vunpack.c.l.b16 %v46
    %v83 = vunpack.c.l.b16 %v47
    %v84 = vunpack.c.l.b16 %v48
    %v85 = vunpack.c.l.b16 %v49
    %v86 = vunpack.c.l.b16 %v50
    %v87 = vunpack.c.l.b16 %v51
    %v88 = vunpack.c.l.b16 %v52
    %v89 = vunpack.c.l.b16 %v53
    %v90 = vunpack.c.l.b16 %v54
    %v91 = vunpack.c.l.b16 %v55
    %v92 = vunpack.c.l.b16 %v56
    %v93 = vunpack.c.l.b16 %v57
    %v94 = vunpack.c.l.b16 %v58
    %v95 = vpack.c.b16 %v80, %v79
    %v96 = vpack.c.b16 %v82, %v81
    %v97 = vpack.c.b16 %v84, %v83
    %v98 = vpack.c.b16 %v86, %v85
    %v99 = vpack.c.b16 %v88, %v87
    %v100 = vpack.c.b16 %v90, %v89
    %v101 = vpack.c.b16 %v92, %v91
    %v102 = vpack.c.b16 %v94, %v93
    %v107 = vunpack.c.l.b16 %v59
    %v108 = vunpack.c.l.b16 %v60
    %v109 = vunpack.c.l.b16 %v61
    %v110 = vunpack.c.l.b16 %v62
    %v111 = vpack.c.b16 %v108, %v107
    %v112 = vpack.c.b16 %v110, %v109
    %vm115 = vcmask 261120
    %v117 = vsel %vm115, %v95, 0
    %v120 = vsel %vm115, %v96, 0
    %v123 = vsel %vm115, %v97, 0
    %v126 = vsel %vm115, %v98, 0
    %v129 = vsel %vm115, %v99, 0
    %v132 = vsel %vm115, %v100, 0
    %v135 = vsel %vm115, %v101, 0
    %v138 = vsel %vm115, %v102, 0
    %140 = vmatpush.bf16.msra.mxu0 0
    %141 = vmatpush.bf16.msra.mxu0 0
    %142 = vmatpush.bf16.msra.mxu0 0
    %143 = vmatpush.bf16.msra.mxu0 0
    %144 = vmatpush.bf16.msra.mxu0 0
    %145 = vmatpush.bf16.msra.mxu0 0
    %146 = vmatpush.bf16.msra.mxu0 %v112
    %147 = vmatpush.bf16.msra.mxu0 %v111
    %148 = vmatmul.bf16.gmra.mxu0 %v117
    %v149 = vpop.f32.mrf.mxu0
    %v150 = vadd.f32 0.0, %v149
    %v151 = vpop.f32.mrf.mxu0
    %v152 = vadd.f32 0.0, %v151
    %153 = vmatmul.bf16.gmra.mxu0 %v120
    %v154 = vpop.f32.mrf.mxu0
    %v155 = vadd.f32 0.0, %v154
    %v156 = vpop.f32.mrf.mxu0
    %v157 = vadd.f32 0.0, %v156
    %158 = vmatmul.bf16.gmra.mxu0 %v123
    %v159 = vpop.f32.mrf.mxu0
    %v160 = vadd.f32 0.0, %v159
    %v161 = vpop.f32.mrf.mxu0
    %v162 = vadd.f32 0.0, %v161
    %163 = vmatmul.bf16.gmra.mxu0 %v126
    %v164 = vpop.f32.mrf.mxu0
    %v165 = vadd.f32 0.0, %v164
    %v166 = vpop.f32.mrf.mxu0
    %v167 = vadd.f32 0.0, %v166
    %168 = vmatmul.bf16.gmra.mxu0 %v129
    %v169 = vpop.f32.mrf.mxu0
    %v170 = vadd.f32 0.0, %v169
    %v171 = vpop.f32.mrf.mxu0
    %v172 = vadd.f32 0.0, %v171
    %173 = vmatmul.bf16.gmra.mxu0 %v132
    %v174 = vpop.f32.mrf.mxu0
    %v175 = vadd.f32 0.0, %v174
    %v176 = vpop.f32.mrf.mxu0
    %v177 = vadd.f32 0.0, %v176
    %178 = vmatmul.bf16.gmra.mxu0 %v135
    %v179 = vpop.f32.mrf.mxu0
    %v180 = vadd.f32 0.0, %v179
    %v181 = vpop.f32.mrf.mxu0
    %v182 = vadd.f32 0.0, %v181
    %183 = vmatmul.bf16.gmra.mxu0 %v138
    %v184 = vpop.f32.mrf.mxu0
    %v185 = vadd.f32 0.0, %v184
    %v186 = vpop.f32.mrf.mxu0
    %v187 = vadd.f32 0.0, %v186
    %188 = vdwg.mxu0
    %v189 = vperm.slane %v41, 0
    %v190 = vmul.f32 %v150, %v189
    %v191 = vmul.f32 %v152, %v189
    %v192 = vmul.f32 %v155, %v189
    %v193 = vmul.f32 %v157, %v189
    %v194 = vmul.f32 %v160, %v189
    %v195 = vmul.f32 %v162, %v189
    %v196 = vmul.f32 %v165, %v189
    %v197 = vmul.f32 %v167, %v189
    %v198 = vmul.f32 %v170, %v189
    %v199 = vmul.f32 %v172, %v189
    %v200 = vmul.f32 %v175, %v189
    %v201 = vmul.f32 %v177, %v189
    %v202 = vmul.f32 %v180, %v189
    %v203 = vmul.f32 %v182, %v189
    %v204 = vmul.f32 %v185, %v189
    %v205 = vmul.f32 %v187, %v189
    %v206 = vperm.slane %v42, 0
    %v207 = vadd.f32 %v190, %v206
    %v208 = vadd.f32 %v191, %v206
    %v209 = vadd.f32 %v192, %v206
    %v210 = vadd.f32 %v193, %v206
    %v211 = vadd.f32 %v194, %v206
    %v212 = vadd.f32 %v195, %v206
    %v213 = vadd.f32 %v196, %v206
    %v214 = vadd.f32 %v197, %v206
    %v215 = vadd.f32 %v198, %v206
    %v216 = vadd.f32 %v199, %v206
    %v217 = vadd.f32 %v200, %v206
    %v218 = vadd.f32 %v201, %v206
    %v219 = vadd.f32 %v202, %v206
    %v220 = vadd.f32 %v203, %v206
    %v221 = vadd.f32 %v204, %v206
    %v222 = vadd.f32 %v205, %v206
    %v223 = vmax.f32 %v207, 0.0
    %v224 = vmax.f32 %v208, 0.0
    %v225 = vmax.f32 %v209, 0.0
    %v226 = vmax.f32 %v210, 0.0
    %v227 = vmax.f32 %v211, 0.0
    %v228 = vmax.f32 %v212, 0.0
    %v229 = vmax.f32 %v213, 0.0
    %v230 = vmax.f32 %v214, 0.0
    %v231 = vmax.f32 %v215, 0.0
    %v232 = vmax.f32 %v216, 0.0
    %v233 = vmax.f32 %v217, 0.0
    %v234 = vmax.f32 %v218, 0.0
    %v235 = vmax.f32 %v219, 0.0
    %v236 = vmax.f32 %v220, 0.0
    %v237 = vmax.f32 %v221, 0.0
    %v238 = vmax.f32 %v222, 0.0
    %v239 = vld [vmem:[%s0 + $0x40] sm:$0xf]
    %v240 = vld [vmem:[%s0 + $0x44] sm:$0xf]
    %v241 = vld [vmem:[%s0 + $0x48] sm:$0xf]
    %v242 = vld [vmem:[%s0 + $0x4c] sm:$0xf]
    %v243 = vld [vmem:[%s0 + $0x50] sm:$0xf]
    %v244 = vld [vmem:[%s0 + $0x54] sm:$0xf]
    %v245 = vld [vmem:[%s0 + $0x58] sm:$0xf]
    %v246 = vld [vmem:[%s0 + $0x5c] sm:$0xf]
    %v247 = vld [vmem:[%s0 + $0x60] sm:$0xf]
    %v248 = vld [vmem:[%s0 + $0x64] sm:$0xf]
    %v249 = vld [vmem:[%s0 + $0x68] sm:$0xf]
    %v250 = vld [vmem:[%s0 + $0x6c] sm:$0xf]
    %v251 = vld [vmem:[%s0 + $0x70] sm:$0xf]
    %v252 = vld [vmem:[%s0 + $0x74] sm:$0xf]
    %v253 = vld [vmem:[%s0 + $0x78] sm:$0xf]
    %v254 = vld [vmem:[%s0 + $0x7c] sm:$0xf]
    %v271 = vunpack.c.l.b16 %v239
    %v272 = vunpack.c.l.b16 %v240
    %v273 = vunpack.c.l.b16 %v241
    %v274 = vunpack.c.l.b16 %v242
    %v275 = vunpack.c.l.b16 %v243
    %v276 = vunpack.c.l.b16 %v244
    %v277 = vunpack.c.l.b16 %v245
    %v278 = vunpack.c.l.b16 %v246
    %v279 = vunpack.c.l.b16 %v247
    %v280 = vunpack.c.l.b16 %v248
    %v281 = vunpack.c.l.b16 %v249
    %v282 = vunpack.c.l.b16 %v250
    %v283 = vunpack.c.l.b16 %v251
    %v284 = vunpack.c.l.b16 %v252
    %v285 = vunpack.c.l.b16 %v253
    %v286 = vunpack.c.l.b16 %v254
    %v287 = vpack.c.b16 %v272, %v271
    %v288 = vpack.c.b16 %v274, %v273
    %v289 = vpack.c.b16 %v276, %v275
    %v290 = vpack.c.b16 %v278, %v277
    %v291 = vpack.c.b16 %v280, %v279
    %v292 = vpack.c.b16 %v282, %v281
    %v293 = vpack.c.b16 %v284, %v283
    %v294 = vpack.c.b16 %v286, %v285
    %v296 = vsel %vm115, %v287, 0
    %v299 = vsel %vm115, %v288, 0
    %v302 = vsel %vm115, %v289, 0
    %v305 = vsel %vm115, %v290, 0
    %v308 = vsel %vm115, %v291, 0
    %v311 = vsel %vm115, %v292, 0
    %v314 = vsel %vm115, %v293, 0
    %v317 = vsel %vm115, %v294, 0
    %319 = vmatpush.bf16.msra.mxu0 0
    %320 = vmatpush.bf16.msra.mxu0 0
    %321 = vmatpush.bf16.msra.mxu0 0
    %322 = vmatpush.bf16.msra.mxu0 0
    %323 = vmatpush.bf16.msra.mxu0 0
    %324 = vmatpush.bf16.msra.mxu0 0
    %325 = vmatpush.bf16.msra.mxu0 %v112
    %326 = vmatpush.bf16.msra.mxu0 %v111
    %327 = vmatmul.bf16.gmra.mxu0 %v296
    %v328 = vpop.f32.mrf.mxu0
    %v329 = vadd.f32 0.0, %v328
    %v330 = vpop.f32.mrf.mxu0
    %v331 = vadd.f32 0.0, %v330
    %332 = vmatmul.bf16.gmra.mxu0 %v299
    %v333 = vpop.f32.mrf.mxu0
    %v334 = vadd.f32 0.0, %v333
    %v335 = vpop.f32.mrf.mxu0
    %v336 = vadd.f32 0.0, %v335
    %337 = vmatmul.bf16.gmra.mxu0 %v302
    %v338 = vpop.f32.mrf.mxu0
    %v339 = vadd.f32 0.0, %v338
    %v340 = vpop.f32.mrf.mxu0
    %v341 = vadd.f32 0.0, %v340
    %342 = vmatmul.bf16.gmra.mxu0 %v305
    %v343 = vpop.f32.mrf.mxu0
    %v344 = vadd.f32 0.0, %v343
    %v345 = vpop.f32.mrf.mxu0
    %v346 = vadd.f32 0.0, %v345
    %347 = vmatmul.bf16.gmra.mxu0 %v308
    %v348 = vpop.f32.mrf.mxu0
    %v349 = vadd.f32 0.0, %v348
    %v350 = vpop.f32.mrf.mxu0
    %v351 = vadd.f32 0.0, %v350
    %352 = vmatmul.bf16.gmra.mxu0 %v311
    %v353 = vpop.f32.mrf.mxu0
    %v354 = vadd.f32 0.0, %v353
    %v355 = vpop.f32.mrf.mxu0
    %v356 = vadd.f32 0.0, %v355
    %357 = vmatmul.bf16.gmra.mxu0 %v314
    %v358 = vpop.f32.mrf.mxu0
    %v359 = vadd.f32 0.0, %v358
    %v360 = vpop.f32.mrf.mxu0
    %v361 = vadd.f32 0.0, %v360
    %362 = vmatmul.bf16.gmra.mxu0 %v317
    %v363 = vpop.f32.mrf.mxu0
    %v364 = vadd.f32 0.0, %v363
    %v365 = vpop.f32.mrf.mxu0
    %v366 = vadd.f32 0.0, %v365
    %367 = vdwg.mxu0
    %v368 = vmul.f32 %v329, %v189
    %v369 = vmul.f32 %v331, %v189
    %v370 = vmul.f32 %v334, %v189
    %v371 = vmul.f32 %v336, %v189
    %v372 = vmul.f32 %v339, %v189
    %v373 = vmul.f32 %v341, %v189
    %v374 = vmul.f32 %v344, %v189
    %v375 = vmul.f32 %v346, %v189
    %v376 = vmul.f32 %v349, %v189
    %v377 = vmul.f32 %v351, %v189
    %v378 = vmul.f32 %v354, %v189
    %v379 = vmul.f32 %v356, %v189
    %v380 = vmul.f32 %v359, %v189
    %v381 = vmul.f32 %v361, %v189
    %v382 = vmul.f32 %v364, %v189
    %v383 = vmul.f32 %v366, %v189
    %v384 = vadd.f32 %v368, %v206
    %v385 = vadd.f32 %v369, %v206
    %v386 = vadd.f32 %v370, %v206
    %v387 = vadd.f32 %v371, %v206
    %v388 = vadd.f32 %v372, %v206
    %v389 = vadd.f32 %v373, %v206
    %v390 = vadd.f32 %v374, %v206
    %v391 = vadd.f32 %v375, %v206
    %v392 = vadd.f32 %v376, %v206
    %v393 = vadd.f32 %v377, %v206
    %v394 = vadd.f32 %v378, %v206
    %v395 = vadd.f32 %v379, %v206
    %v396 = vadd.f32 %v380, %v206
    %v397 = vadd.f32 %v381, %v206
    %v398 = vadd.f32 %v382, %v206
    %v399 = vadd.f32 %v383, %v206
    %v400 = vmax.f32 %v384, 0.0
    %v401 = vmax.f32 %v385, 0.0
    %v402 = vmax.f32 %v386, 0.0
    %v403 = vmax.f32 %v387, 0.0
    %v404 = vmax.f32 %v388, 0.0
    %v405 = vmax.f32 %v389, 0.0
    %v406 = vmax.f32 %v390, 0.0
    %v407 = vmax.f32 %v391, 0.0
    %v408 = vmax.f32 %v392, 0.0
    %v409 = vmax.f32 %v393, 0.0
    %v410 = vmax.f32 %v394, 0.0
    %v411 = vmax.f32 %v395, 0.0
    %v412 = vmax.f32 %v396, 0.0
    %v413 = vmax.f32 %v397, 0.0
    %v414 = vmax.f32 %v398, 0.0
    %v415 = vmax.f32 %v399, 0.0
    %v416 = vmax.f32 %v223, %v400
    %v417 = vmax.f32 %v224, %v401
    %v418 = vmax.f32 %v225, %v402
    %v419 = vmax.f32 %v226, %v403
    %v420 = vmax.f32 %v227, %v404
    %v421 = vmax.f32 %v228, %v405
    %v422 = vmax.f32 %v229, %v406
    %v423 = vmax.f32 %v230, %v407
    %v424 = vmax.f32 %v231, %v408
    %v425 = vmax.f32 %v232, %v409
    %v426 = vmax.f32 %v233, %v410
    %v427 = vmax.f32 %v234, %v411
    %v428 = vmax.f32 %v235, %v412
    %v429 = vmax.f32 %v236, %v413
    %v430 = vmax.f32 %v237, %v414
    %v431 = vmax.f32 %v238, %v415
    %v432 = vld [vmem:[%s0 + $0x80] sm:$0xf]
    %v433 = vld [vmem:[%s0 + $0x84] sm:$0xf]
    %v434 = vld [vmem:[%s0 + $0x88] sm:$0xf]
    %v435 = vld [vmem:[%s0 + $0x8c] sm:$0xf]
    %v436 = vld [vmem:[%s0 + $0x90] sm:$0xf]
    %v437 = vld [vmem:[%s0 + $0x94] sm:$0xf]
    %v438 = vld [vmem:[%s0 + $0x98] sm:$0xf]
    %v439 = vld [vmem:[%s0 + $0x9c] sm:$0xf]
    %v440 = vld [vmem:[%s0 + $0xa0] sm:$0xf]
    %v441 = vld [vmem:[%s0 + $0xa4] sm:$0xf]
    %v442 = vld [vmem:[%s0 + $0xa8] sm:$0xf]
    %v443 = vld [vmem:[%s0 + $0xac] sm:$0xf]
    %v444 = vld [vmem:[%s0 + $0xb0] sm:$0xf]
    %v445 = vld [vmem:[%s0 + $0xb4] sm:$0xf]
    %v446 = vld [vmem:[%s0 + $0xb8] sm:$0xf]
    %v447 = vld [vmem:[%s0 + $0xbc] sm:$0xf]
    %v464 = vunpack.c.l.b16 %v432
    %v465 = vunpack.c.l.b16 %v433
    %v466 = vunpack.c.l.b16 %v434
    %v467 = vunpack.c.l.b16 %v435
    %v468 = vunpack.c.l.b16 %v436
    %v469 = vunpack.c.l.b16 %v437
    %v470 = vunpack.c.l.b16 %v438
    %v471 = vunpack.c.l.b16 %v439
    %v472 = vunpack.c.l.b16 %v440
    %v473 = vunpack.c.l.b16 %v441
    %v474 = vunpack.c.l.b16 %v442
    %v475 = vunpack.c.l.b16 %v443
    %v476 = vunpack.c.l.b16 %v444
    %v477 = vunpack.c.l.b16 %v445
    %v478 = vunpack.c.l.b16 %v446
    %v479 = vunpack.c.l.b16 %v447
    %v480 = vpack.c.b16 %v465, %v464
    %v481 = vpack.c.b16 %v467, %v466
    %v482 = vpack.c.b16 %v469, %v468
    %v483 = vpack.c.b16 %v471, %v470
    %v484 = vpack.c.b16 %v473, %v472
    %v485 = vpack.c.b16 %v475, %v474
    %v486 = vpack.c.b16 %v477, %v476
    %v487 = vpack.c.b16 %v479, %v478
    %v489 = vsel %vm115, %v480, 0
    %v492 = vsel %vm115, %v481, 0
    %v495 = vsel %vm115, %v482, 0
    %v498 = vsel %vm115, %v483, 0
    %v501 = vsel %vm115, %v484, 0
    %v504 = vsel %vm115, %v485, 0
    %v507 = vsel %vm115, %v486, 0
    %v510 = vsel %vm115, %v487, 0
    %512 = vmatpush.bf16.msra.mxu0 0
    %513 = vmatpush.bf16.msra.mxu0 0
    %514 = vmatpush.bf16.msra.mxu0 0
    %515 = vmatpush.bf16.msra.mxu0 0
    %516 = vmatpush.bf16.msra.mxu0 0
    %517 = vmatpush.bf16.msra.mxu0 0
    %518 = vmatpush.bf16.msra.mxu0 %v112
    %519 = vmatpush.bf16.msra.mxu0 %v111
    %520 = vmatmul.bf16.gmra.mxu0 %v489
    %v521 = vpop.f32.mrf.mxu0
    %v522 = vadd.f32 0.0, %v521
    %v523 = vpop.f32.mrf.mxu0
    %v524 = vadd.f32 0.0, %v523
    %525 = vmatmul.bf16.gmra.mxu0 %v492
    %v526 = vpop.f32.mrf.mxu0
    %v527 = vadd.f32 0.0, %v526
    %v528 = vpop.f32.mrf.mxu0
    %v529 = vadd.f32 0.0, %v528
    %530 = vmatmul.bf16.gmra.mxu0 %v495
    %v531 = vpop.f32.mrf.mxu0
    %v532 = vadd.f32 0.0, %v531
    %v533 = vpop.f32.mrf.mxu0
    %v534 = vadd.f32 0.0, %v533
    %535 = vmatmul.bf16.gmra.mxu0 %v498
    %v536 = vpop.f32.mrf.mxu0
    %v537 = vadd.f32 0.0, %v536
    %v538 = vpop.f32.mrf.mxu0
    %v539 = vadd.f32 0.0, %v538
    %540 = vmatmul.bf16.gmra.mxu0 %v501
    %v541 = vpop.f32.mrf.mxu0
    %v542 = vadd.f32 0.0, %v541
    %v543 = vpop.f32.mrf.mxu0
    %v544 = vadd.f32 0.0, %v543
    %545 = vmatmul.bf16.gmra.mxu0 %v504
    %v546 = vpop.f32.mrf.mxu0
    %v547 = vadd.f32 0.0, %v546
    %v548 = vpop.f32.mrf.mxu0
    %v549 = vadd.f32 0.0, %v548
    %550 = vmatmul.bf16.gmra.mxu0 %v507
    %v551 = vpop.f32.mrf.mxu0
    %v552 = vadd.f32 0.0, %v551
    %v553 = vpop.f32.mrf.mxu0
    %v554 = vadd.f32 0.0, %v553
    %555 = vmatmul.bf16.gmra.mxu0 %v510
    %v556 = vpop.f32.mrf.mxu0
    %v557 = vadd.f32 0.0, %v556
    %v558 = vpop.f32.mrf.mxu0
    %v559 = vadd.f32 0.0, %v558
    %560 = vdwg.mxu0
    %v561 = vmul.f32 %v522, %v189
    %v562 = vmul.f32 %v524, %v189
    %v563 = vmul.f32 %v527, %v189
    %v564 = vmul.f32 %v529, %v189
    %v565 = vmul.f32 %v532, %v189
    %v566 = vmul.f32 %v534, %v189
    %v567 = vmul.f32 %v537, %v189
    %v568 = vmul.f32 %v539, %v189
    %v569 = vmul.f32 %v542, %v189
    %v570 = vmul.f32 %v544, %v189
    %v571 = vmul.f32 %v547, %v189
    %v572 = vmul.f32 %v549, %v189
    %v573 = vmul.f32 %v552, %v189
    %v574 = vmul.f32 %v554, %v189
    %v575 = vmul.f32 %v557, %v189
    %v576 = vmul.f32 %v559, %v189
    %v577 = vadd.f32 %v561, %v206
    %v578 = vadd.f32 %v562, %v206
    %v579 = vadd.f32 %v563, %v206
    %v580 = vadd.f32 %v564, %v206
    %v581 = vadd.f32 %v565, %v206
    %v582 = vadd.f32 %v566, %v206
    %v583 = vadd.f32 %v567, %v206
    %v584 = vadd.f32 %v568, %v206
    %v585 = vadd.f32 %v569, %v206
    %v586 = vadd.f32 %v570, %v206
    %v587 = vadd.f32 %v571, %v206
    %v588 = vadd.f32 %v572, %v206
    %v589 = vadd.f32 %v573, %v206
    %v590 = vadd.f32 %v574, %v206
    %v591 = vadd.f32 %v575, %v206
    %v592 = vadd.f32 %v576, %v206
    %v593 = vmax.f32 %v577, 0.0
    %v594 = vmax.f32 %v578, 0.0
    %v595 = vmax.f32 %v579, 0.0
    %v596 = vmax.f32 %v580, 0.0
    %v597 = vmax.f32 %v581, 0.0
    %v598 = vmax.f32 %v582, 0.0
    %v599 = vmax.f32 %v583, 0.0
    %v600 = vmax.f32 %v584, 0.0
    %v601 = vmax.f32 %v585, 0.0
    %v602 = vmax.f32 %v586, 0.0
    %v603 = vmax.f32 %v587, 0.0
    %v604 = vmax.f32 %v588, 0.0
    %v605 = vmax.f32 %v589, 0.0
    %v606 = vmax.f32 %v590, 0.0
    %v607 = vmax.f32 %v591, 0.0
    %v608 = vmax.f32 %v592, 0.0
    %v609 = vmax.f32 %v416, %v593
    %v610 = vmax.f32 %v417, %v594
    %v611 = vmax.f32 %v418, %v595
    %v612 = vmax.f32 %v419, %v596
    %v613 = vmax.f32 %v420, %v597
    %v614 = vmax.f32 %v421, %v598
    %v615 = vmax.f32 %v422, %v599
    %v616 = vmax.f32 %v423, %v600
    %v617 = vmax.f32 %v424, %v601
    %v618 = vmax.f32 %v425, %v602
    %v619 = vmax.f32 %v426, %v603
    %v620 = vmax.f32 %v427, %v604
    %v621 = vmax.f32 %v428, %v605
    %v622 = vmax.f32 %v429, %v606
    %v623 = vmax.f32 %v430, %v607
    %v624 = vmax.f32 %v431, %v608
    %v625 = vld [vmem:[%s0 + $0xc0] sm:$0xf]
    %v626 = vld [vmem:[%s0 + $0xc4] sm:$0xf]
    %v627 = vld [vmem:[%s0 + $0xc8] sm:$0xf]
    %v628 = vld [vmem:[%s0 + $0xcc] sm:$0xf]
    %v629 = vld [vmem:[%s0 + $0xd0] sm:$0xf]
    %v630 = vld [vmem:[%s0 + $0xd4] sm:$0xf]
    %v631 = vld [vmem:[%s0 + $0xd8] sm:$0xf]
    %v632 = vld [vmem:[%s0 + $0xdc] sm:$0xf]
    %v633 = vld [vmem:[%s0 + $0xe0] sm:$0xf]
    %v634 = vld [vmem:[%s0 + $0xe4] sm:$0xf]
    %v635 = vld [vmem:[%s0 + $0xe8] sm:$0xf]
    %v636 = vld [vmem:[%s0 + $0xec] sm:$0xf]
    %v637 = vld [vmem:[%s0 + $0xf0] sm:$0xf]
    %v638 = vld [vmem:[%s0 + $0xf4] sm:$0xf]
    %v639 = vld [vmem:[%s0 + $0xf8] sm:$0xf]
    %v640 = vld [vmem:[%s0 + $0xfc] sm:$0xf]
    %v657 = vunpack.c.l.b16 %v625
    %v658 = vunpack.c.l.b16 %v626
    %v659 = vunpack.c.l.b16 %v627
    %v660 = vunpack.c.l.b16 %v628
    %v661 = vunpack.c.l.b16 %v629
    %v662 = vunpack.c.l.b16 %v630
    %v663 = vunpack.c.l.b16 %v631
    %v664 = vunpack.c.l.b16 %v632
    %v665 = vunpack.c.l.b16 %v633
    %v666 = vunpack.c.l.b16 %v634
    %v667 = vunpack.c.l.b16 %v635
    %v668 = vunpack.c.l.b16 %v636
    %v669 = vunpack.c.l.b16 %v637
    %v670 = vunpack.c.l.b16 %v638
    %v671 = vunpack.c.l.b16 %v639
    %v672 = vunpack.c.l.b16 %v640
    %v673 = vpack.c.b16 %v658, %v657
    %v674 = vpack.c.b16 %v660, %v659
    %v675 = vpack.c.b16 %v662, %v661
    %v676 = vpack.c.b16 %v664, %v663
    %v677 = vpack.c.b16 %v666, %v665
    %v678 = vpack.c.b16 %v668, %v667
    %v679 = vpack.c.b16 %v670, %v669
    %v680 = vpack.c.b16 %v672, %v671
    %v682 = vsel %vm115, %v673, 0
    %v685 = vsel %vm115, %v674, 0
    %v688 = vsel %vm115, %v675, 0
    %v691 = vsel %vm115, %v676, 0
    %v694 = vsel %vm115, %v677, 0
    %v697 = vsel %vm115, %v678, 0
    %v700 = vsel %vm115, %v679, 0
    %v703 = vsel %vm115, %v680, 0
    %705 = vmatpush.bf16.msra.mxu0 0
    %706 = vmatpush.bf16.msra.mxu0 0
    %707 = vmatpush.bf16.msra.mxu0 0
    %708 = vmatpush.bf16.msra.mxu0 0
    %709 = vmatpush.bf16.msra.mxu0 0
    %710 = vmatpush.bf16.msra.mxu0 0
    %711 = vmatpush.bf16.msra.mxu0 %v112
    %712 = vmatpush.bf16.msra.mxu0 %v111
    %713 = vmatmul.bf16.gmra.mxu0 %v682
    %v714 = vpop.f32.mrf.mxu0
    %v715 = vadd.f32 0.0, %v714
    %v716 = vpop.f32.mrf.mxu0
    %v717 = vadd.f32 0.0, %v716
    %718 = vmatmul.bf16.gmra.mxu0 %v685
    %v719 = vpop.f32.mrf.mxu0
    %v720 = vadd.f32 0.0, %v719
    %v721 = vpop.f32.mrf.mxu0
    %v722 = vadd.f32 0.0, %v721
    %723 = vmatmul.bf16.gmra.mxu0 %v688
    %v724 = vpop.f32.mrf.mxu0
    %v725 = vadd.f32 0.0, %v724
    %v726 = vpop.f32.mrf.mxu0
    %v727 = vadd.f32 0.0, %v726
    %728 = vmatmul.bf16.gmra.mxu0 %v691
    %v729 = vpop.f32.mrf.mxu0
    %v730 = vadd.f32 0.0, %v729
    %v731 = vpop.f32.mrf.mxu0
    %v732 = vadd.f32 0.0, %v731
    %733 = vmatmul.bf16.gmra.mxu0 %v694
    %v734 = vpop.f32.mrf.mxu0
    %v735 = vadd.f32 0.0, %v734
    %v736 = vpop.f32.mrf.mxu0
    %v737 = vadd.f32 0.0, %v736
    %738 = vmatmul.bf16.gmra.mxu0 %v697
    %v739 = vpop.f32.mrf.mxu0
    %v740 = vadd.f32 0.0, %v739
    %v741 = vpop.f32.mrf.mxu0
    %v742 = vadd.f32 0.0, %v741
    %743 = vmatmul.bf16.gmra.mxu0 %v700
    %v744 = vpop.f32.mrf.mxu0
    %v745 = vadd.f32 0.0, %v744
    %v746 = vpop.f32.mrf.mxu0
    %v747 = vadd.f32 0.0, %v746
    %748 = vmatmul.bf16.gmra.mxu0 %v703
    %v749 = vpop.f32.mrf.mxu0
    %v750 = vadd.f32 0.0, %v749
    %v751 = vpop.f32.mrf.mxu0
    %v752 = vadd.f32 0.0, %v751
    %753 = vdwg.mxu0
    %v754 = vmul.f32 %v715, %v189
    %v755 = vmul.f32 %v717, %v189
    %v756 = vmul.f32 %v720, %v189
    %v757 = vmul.f32 %v722, %v189
    %v758 = vmul.f32 %v725, %v189
    %v759 = vmul.f32 %v727, %v189
    %v760 = vmul.f32 %v730, %v189
    %v761 = vmul.f32 %v732, %v189
    %v762 = vmul.f32 %v735, %v189
    %v763 = vmul.f32 %v737, %v189
    %v764 = vmul.f32 %v740, %v189
    %v765 = vmul.f32 %v742, %v189
    %v766 = vmul.f32 %v745, %v189
    %v767 = vmul.f32 %v747, %v189
    %v768 = vmul.f32 %v750, %v189
    %v769 = vmul.f32 %v752, %v189
    %v770 = vadd.f32 %v754, %v206
    %v771 = vadd.f32 %v755, %v206
    %v772 = vadd.f32 %v756, %v206
    %v773 = vadd.f32 %v757, %v206
    %v774 = vadd.f32 %v758, %v206
    %v775 = vadd.f32 %v759, %v206
    %v776 = vadd.f32 %v760, %v206
    %v777 = vadd.f32 %v761, %v206
    %v778 = vadd.f32 %v762, %v206
    %v779 = vadd.f32 %v763, %v206
    %v780 = vadd.f32 %v764, %v206
    %v781 = vadd.f32 %v765, %v206
    %v782 = vadd.f32 %v766, %v206
    %v783 = vadd.f32 %v767, %v206
    %v784 = vadd.f32 %v768, %v206
    %v785 = vadd.f32 %v769, %v206
    %v786 = vmax.f32 %v770, 0.0
    %v787 = vmax.f32 %v771, 0.0
    %v788 = vmax.f32 %v772, 0.0
    %v789 = vmax.f32 %v773, 0.0
    %v790 = vmax.f32 %v774, 0.0
    %v791 = vmax.f32 %v775, 0.0
    %v792 = vmax.f32 %v776, 0.0
    %v793 = vmax.f32 %v777, 0.0
    %v794 = vmax.f32 %v778, 0.0
    %v795 = vmax.f32 %v779, 0.0
    %v796 = vmax.f32 %v780, 0.0
    %v797 = vmax.f32 %v781, 0.0
    %v798 = vmax.f32 %v782, 0.0
    %v799 = vmax.f32 %v783, 0.0
    %v800 = vmax.f32 %v784, 0.0
    %v801 = vmax.f32 %v785, 0.0
    %v802 = vmax.f32 %v609, %v786
    %v803 = vmax.f32 %v610, %v787
    %v804 = vmax.f32 %v611, %v788
    %v805 = vmax.f32 %v612, %v789
    %v806 = vmax.f32 %v613, %v790
    %v807 = vmax.f32 %v614, %v791
    %v808 = vmax.f32 %v615, %v792
    %v809 = vmax.f32 %v616, %v793
    %v810 = vmax.f32 %v617, %v794
    %v811 = vmax.f32 %v618, %v795
    %v812 = vmax.f32 %v619, %v796
    %v813 = vmax.f32 %v620, %v797
    %v814 = vmax.f32 %v621, %v798
    %v815 = vmax.f32 %v622, %v799
    %v816 = vmax.f32 %v623, %v800
    %v817 = vmax.f32 %v624, %v801
    %818 = vst [vmem:[#allocation2] sm:$0xff] %v802
    %819 = vst [vmem:[#allocation2 + $0x8] sm:$0xff] %v803
    %820 = vst [vmem:[#allocation2 + $0x10] sm:$0xff] %v804
    %821 = vst [vmem:[#allocation2 + $0x18] sm:$0xff] %v805
    %822 = vst [vmem:[#allocation2 + $0x20] sm:$0xff] %v806
    %823 = vst [vmem:[#allocation2 + $0x28] sm:$0xff] %v807
    %824 = vst [vmem:[#allocation2 + $0x30] sm:$0xff] %v808
    %825 = vst [vmem:[#allocation2 + $0x38] sm:$0xff] %v809
    %826 = vst [vmem:[#allocation2 + $0x40] sm:$0xff] %v810
    %827 = vst [vmem:[#allocation2 + $0x48] sm:$0xff] %v811
    %828 = vst [vmem:[#allocation2 + $0x50] sm:$0xff] %v812
    %829 = vst [vmem:[#allocation2 + $0x58] sm:$0xff] %v813
    %830 = vst [vmem:[#allocation2 + $0x60] sm:$0xff] %v814
    %831 = vst [vmem:[#allocation2 + $0x68] sm:$0xff] %v815
    %832 = vst [vmem:[#allocation2 + $0x70] sm:$0xff] %v816
    %833 = vst [vmem:[#allocation2 + $0x78] sm:$0xff] %v817
    %v834 = vld [vmem:[#allocation2] sm:$0xff]
    %v835 = vld [vmem:[#allocation2 + $0x8] sm:$0xff]
    %v836 = vld [vmem:[#allocation2 + $0x10] sm:$0xff]
    %v837 = vld [vmem:[#allocation2 + $0x18] sm:$0xff]
    %v838 = vld [vmem:[#allocation2 + $0x20] sm:$0xff]
    %v839 = vld [vmem:[#allocation2 + $0x28] sm:$0xff]
    %v840 = vld [vmem:[#allocation2 + $0x30] sm:$0xff]
    %v841 = vld [vmem:[#allocation2 + $0x38] sm:$0xff]
    %v842 = vld [vmem:[#allocation2 + $0x40] sm:$0xff]
    %v843 = vld [vmem:[#allocation2 + $0x48] sm:$0xff]
    %v844 = vld [vmem:[#allocation2 + $0x50] sm:$0xff]
    %v845 = vld [vmem:[#allocation2 + $0x58] sm:$0xff]
    %v846 = vld [vmem:[#allocation2 + $0x60] sm:$0xff]
    %v847 = vld [vmem:[#allocation2 + $0x68] sm:$0xff]
    %v848 = vld [vmem:[#allocation2 + $0x70] sm:$0xff]
    %v849 = vld [vmem:[#allocation2 + $0x78] sm:$0xff]
    %v850 = vpack.c.bf16 %v834, %v834
    %v851 = vpack.c.bf16 %v835, %v835
    %v852 = vpack.c.bf16 %v836, %v836
    %v853 = vpack.c.bf16 %v837, %v837
    %v854 = vpack.c.bf16 %v838, %v838
    %v855 = vpack.c.bf16 %v839, %v839
    %v856 = vpack.c.bf16 %v840, %v840
    %v857 = vpack.c.bf16 %v841, %v841
    %v858 = vpack.c.bf16 %v842, %v842
    %v859 = vpack.c.bf16 %v843, %v843
    %v860 = vpack.c.bf16 %v844, %v844
    %v861 = vpack.c.bf16 %v845, %v845
    %v862 = vpack.c.bf16 %v846, %v846
    %v863 = vpack.c.bf16 %v847, %v847
    %v864 = vpack.c.bf16 %v848, %v848
    %v865 = vpack.c.bf16 %v849, %v849
    %v866 = vld [vmem:[#allocation3] sm:$0xff]
    %v867 = vld [vmem:[#allocation3 + $0x8] sm:$0xff]
    %v868 = vld [vmem:[#allocation3 + $0x10] sm:$0xff]
    %v869 = vld [vmem:[#allocation3 + $0x18] sm:$0xff]
    %v870 = vld [vmem:[#allocation3 + $0x20] sm:$0xff]
    %v871 = vld [vmem:[#allocation3 + $0x28] sm:$0xff]
    %v872 = vld [vmem:[#allocation3 + $0x30] sm:$0xff]
    %v873 = vld [vmem:[#allocation3 + $0x38] sm:$0xff]
    %v874 = vld [vmem:[#allocation3 + $0x40] sm:$0xff]
    %v875 = vld [vmem:[#allocation3 + $0x48] sm:$0xff]
    %v876 = vld [vmem:[#allocation3 + $0x50] sm:$0xff]
    %v877 = vld [vmem:[#allocation3 + $0x58] sm:$0xff]
    %v878 = vld [vmem:[#allocation3 + $0x60] sm:$0xff]
    %v879 = vld [vmem:[#allocation3 + $0x68] sm:$0xff]
    %v880 = vld [vmem:[#allocation3 + $0x70] sm:$0xff]
    %v881 = vld [vmem:[#allocation3 + $0x78] sm:$0xff]
    %v882 = vld [vmem:[#allocation3 + $0x80] sm:$0xff]
    %v883 = vld [vmem:[#allocation3 + $0x88] sm:$0xff]
    %v884 = vld [vmem:[#allocation3 + $0x90] sm:$0xff]
    %v885 = vld [vmem:[#allocation3 + $0x98] sm:$0xff]
    %v886 = vld [vmem:[#allocation3 + $0xa0] sm:$0xff]
    %v887 = vld [vmem:[#allocation3 + $0xa8] sm:$0xff]
    %v888 = vld [vmem:[#allocation3 + $0xb0] sm:$0xff]
    %v889 = vld [vmem:[#allocation3 + $0xb8] sm:$0xff]
    %v890 = vld [vmem:[#allocation3 + $0xc0] sm:$0xff]
    %v891 = vld [vmem:[#allocation3 + $0xc8] sm:$0xff]
    %v892 = vld [vmem:[#allocation3 + $0xd0] sm:$0xff]
    %v893 = vld [vmem:[#allocation3 + $0xd8] sm:$0xff]
    %v894 = vld [vmem:[#allocation3 + $0xe0] sm:$0xff]
    %v895 = vld [vmem:[#allocation3 + $0xe8] sm:$0xff]
    %v896 = vld [vmem:[#allocation3 + $0xf0] sm:$0xff]
    %v897 = vld [vmem:[#allocation3 + $0xf8] sm:$0xff]
    %v898 = vld [vmem:[#allocation3 + $0x100] sm:$0xff]
    %v899 = vld [vmem:[#allocation3 + $0x108] sm:$0xff]
    %v900 = vld [vmem:[#allocation3 + $0x110] sm:$0xff]
    %v901 = vld [vmem:[#allocation3 + $0x118] sm:$0xff]
    %v902 = vld [vmem:[#allocation3 + $0x120] sm:$0xff]
    %v903 = vld [vmem:[#allocation3 + $0x128] sm:$0xff]
    %v904 = vld [vmem:[#allocation3 + $0x130] sm:$0xff]
    %v905 = vld [vmem:[#allocation3 + $0x138] sm:$0xff]
    %v906 = vld [vmem:[#allocation3 + $0x140] sm:$0xff]
    %v907 = vld [vmem:[#allocation3 + $0x148] sm:$0xff]
    %v908 = vld [vmem:[#allocation3 + $0x150] sm:$0xff]
    %v909 = vld [vmem:[#allocation3 + $0x158] sm:$0xff]
    %v910 = vld [vmem:[#allocation3 + $0x160] sm:$0xff]
    %v911 = vld [vmem:[#allocation3 + $0x168] sm:$0xff]
    %v912 = vld [vmem:[#allocation3 + $0x170] sm:$0xff]
    %v913 = vld [vmem:[#allocation3 + $0x178] sm:$0xff]
    %v914 = vld [vmem:[#allocation3 + $0x180] sm:$0xff]
    %v915 = vld [vmem:[#allocation3 + $0x188] sm:$0xff]
    %v916 = vld [vmem:[#allocation3 + $0x190] sm:$0xff]
    %v917 = vld [vmem:[#allocation3 + $0x198] sm:$0xff]
    %v918 = vld [vmem:[#allocation3 + $0x1a0] sm:$0xff]
    %v919 = vld [vmem:[#allocation3 + $0x1a8] sm:$0xff]
    %v920 = vld [vmem:[#allocation3 + $0x1b0] sm:$0xff]
    %v921 = vld [vmem:[#allocation3 + $0x1b8] sm:$0xff]
    %v922 = vld [vmem:[#allocation3 + $0x1c0] sm:$0xff]
    %v923 = vld [vmem:[#allocation3 + $0x1c8] sm:$0xff]
    %v924 = vld [vmem:[#allocation3 + $0x1d0] sm:$0xff]
    %v925 = vld [vmem:[#allocation3 + $0x1d8] sm:$0xff]
    %v926 = vld [vmem:[#allocation3 + $0x1e0] sm:$0xff]
    %v927 = vld [vmem:[#allocation3 + $0x1e8] sm:$0xff]
    %v928 = vld [vmem:[#allocation3 + $0x1f0] sm:$0xff]
    %v929 = vld [vmem:[#allocation3 + $0x1f8] sm:$0xff]
    %v930 = vld [vmem:[#allocation3 + $0x200] sm:$0xff]
    %v931 = vld [vmem:[#allocation3 + $0x208] sm:$0xff]
    %v932 = vld [vmem:[#allocation3 + $0x210] sm:$0xff]
    %v933 = vld [vmem:[#allocation3 + $0x218] sm:$0xff]
    %v934 = vld [vmem:[#allocation3 + $0x220] sm:$0xff]
    %v935 = vld [vmem:[#allocation3 + $0x228] sm:$0xff]
    %v936 = vld [vmem:[#allocation3 + $0x230] sm:$0xff]
    %v937 = vld [vmem:[#allocation3 + $0x238] sm:$0xff]
    %v938 = vld [vmem:[#allocation3 + $0x240] sm:$0xff]
    %v939 = vld [vmem:[#allocation3 + $0x248] sm:$0xff]
    %v940 = vld [vmem:[#allocation3 + $0x250] sm:$0xff]
    %v941 = vld [vmem:[#allocation3 + $0x258] sm:$0xff]
    %v942 = vld [vmem:[#allocation3 + $0x260] sm:$0xff]
    %v943 = vld [vmem:[#allocation3 + $0x268] sm:$0xff]
    %v944 = vld [vmem:[#allocation3 + $0x270] sm:$0xff]
    %v945 = vld [vmem:[#allocation3 + $0x278] sm:$0xff]
    %v946 = vld [vmem:[#allocation3 + $0x280] sm:$0xff]
    %v947 = vld [vmem:[#allocation3 + $0x288] sm:$0xff]
    %v948 = vld [vmem:[#allocation3 + $0x290] sm:$0xff]
    %v949 = vld [vmem:[#allocation3 + $0x298] sm:$0xff]
    %v950 = vld [vmem:[#allocation3 + $0x2a0] sm:$0xff]
    %v951 = vld [vmem:[#allocation3 + $0x2a8] sm:$0xff]
    %v952 = vld [vmem:[#allocation3 + $0x2b0] sm:$0xff]
    %v953 = vld [vmem:[#allocation3 + $0x2b8] sm:$0xff]
    %v954 = vld [vmem:[#allocation3 + $0x2c0] sm:$0xff]
    %v955 = vld [vmem:[#allocation3 + $0x2c8] sm:$0xff]
    %v956 = vld [vmem:[#allocation3 + $0x2d0] sm:$0xff]
    %v957 = vld [vmem:[#allocation3 + $0x2d8] sm:$0xff]
    %v958 = vld [vmem:[#allocation3 + $0x2e0] sm:$0xff]
    %v959 = vld [vmem:[#allocation3 + $0x2e8] sm:$0xff]
    %v960 = vld [vmem:[#allocation3 + $0x2f0] sm:$0xff]
    %v961 = vld [vmem:[#allocation3 + $0x2f8] sm:$0xff]
    %v962 = vld [vmem:[#allocation3 + $0x300] sm:$0xff]
    %v963 = vld [vmem:[#allocation3 + $0x308] sm:$0xff]
    %v964 = vld [vmem:[#allocation3 + $0x310] sm:$0xff]
    %v965 = vld [vmem:[#allocation3 + $0x318] sm:$0xff]
    %v966 = vld [vmem:[#allocation3 + $0x320] sm:$0xff]
    %v967 = vld [vmem:[#allocation3 + $0x328] sm:$0xff]
    %v968 = vld [vmem:[#allocation3 + $0x330] sm:$0xff]
    %v969 = vld [vmem:[#allocation3 + $0x338] sm:$0xff]
    %v970 = vld [vmem:[#allocation3 + $0x340] sm:$0xff]
    %v971 = vld [vmem:[#allocation3 + $0x348] sm:$0xff]
    %v972 = vld [vmem:[#allocation3 + $0x350] sm:$0xff]
    %v973 = vld [vmem:[#allocation3 + $0x358] sm:$0xff]
    %v974 = vld [vmem:[#allocation3 + $0x360] sm:$0xff]
    %v975 = vld [vmem:[#allocation3 + $0x368] sm:$0xff]
    %v976 = vld [vmem:[#allocation3 + $0x370] sm:$0xff]
    %v977 = vld [vmem:[#allocation3 + $0x378] sm:$0xff]
    %v978 = vld [vmem:[#allocation3 + $0x380] sm:$0xff]
    %v979 = vld [vmem:[#allocation3 + $0x388] sm:$0xff]
    %v980 = vld [vmem:[#allocation3 + $0x390] sm:$0xff]
    %v981 = vld [vmem:[#allocation3 + $0x398] sm:$0xff]
    %v982 = vld [vmem:[#allocation3 + $0x3a0] sm:$0xff]
    %v983 = vld [vmem:[#allocation3 + $0x3a8] sm:$0xff]
    %v984 = vld [vmem:[#allocation3 + $0x3b0] sm:$0xff]
    %v985 = vld [vmem:[#allocation3 + $0x3b8] sm:$0xff]
    %v986 = vld [vmem:[#allocation3 + $0x3c0] sm:$0xff]
    %v987 = vld [vmem:[#allocation3 + $0x3c8] sm:$0xff]
    %v988 = vld [vmem:[#allocation3 + $0x3d0] sm:$0xff]
    %v989 = vld [vmem:[#allocation3 + $0x3d8] sm:$0xff]
    %v990 = vld [vmem:[#allocation3 + $0x3e0] sm:$0xff]
    %v991 = vld [vmem:[#allocation3 + $0x3e8] sm:$0xff]
    %v992 = vld [vmem:[#allocation3 + $0x3f0] sm:$0xff]
    %v993 = vld [vmem:[#allocation3 + $0x3f8] sm:$0xff]
    %v994 = vld [vmem:[#allocation3 + $0x400] sm:$0xff]
    %v995 = vld [vmem:[#allocation3 + $0x408] sm:$0xff]
    %v996 = vld [vmem:[#allocation3 + $0x410] sm:$0xff]
    %v997 = vld [vmem:[#allocation3 + $0x418] sm:$0xff]
    %v998 = vld [vmem:[#allocation3 + $0x420] sm:$0xff]
    %v999 = vld [vmem:[#allocation3 + $0x428] sm:$0xff]
    %v1000 = vld [vmem:[#allocation3 + $0x430] sm:$0xff]
    %v1001 = vld [vmem:[#allocation3 + $0x438] sm:$0xff]
    %v1002 = vld [vmem:[#allocation3 + $0x440] sm:$0xff]
    %v1003 = vld [vmem:[#allocation3 + $0x448] sm:$0xff]
    %v1004 = vld [vmem:[#allocation3 + $0x450] sm:$0xff]
    %v1005 = vld [vmem:[#allocation3 + $0x458] sm:$0xff]
    %v1006 = vld [vmem:[#allocation3 + $0x460] sm:$0xff]
    %v1007 = vld [vmem:[#allocation3 + $0x468] sm:$0xff]
    %v1008 = vld [vmem:[#allocation3 + $0x470] sm:$0xff]
    %v1009 = vld [vmem:[#allocation3 + $0x478] sm:$0xff]
    %v1010 = vld [vmem:[#allocation3 + $0x480] sm:$0xff]
    %v1011 = vld [vmem:[#allocation3 + $0x488] sm:$0xff]
    %v1012 = vld [vmem:[#allocation3 + $0x490] sm:$0xff]
    %v1013 = vld [vmem:[#allocation3 + $0x498] sm:$0xff]
    %v1014 = vld [vmem:[#allocation3 + $0x4a0] sm:$0xff]
    %v1015 = vld [vmem:[#allocation3 + $0x4a8] sm:$0xff]
    %v1016 = vld [vmem:[#allocation3 + $0x4b0] sm:$0xff]
    %v1017 = vld [vmem:[#allocation3 + $0x4b8] sm:$0xff]
    %v1018 = vld [vmem:[#allocation3 + $0x4c0] sm:$0xff]
    %v1019 = vld [vmem:[#allocation3 + $0x4c8] sm:$0xff]
    %v1020 = vld [vmem:[#allocation3 + $0x4d0] sm:$0xff]
    %v1021 = vld [vmem:[#allocation3 + $0x4d8] sm:$0xff]
    %v1022 = vld [vmem:[#allocation3 + $0x4e0] sm:$0xff]
    %v1023 = vld [vmem:[#allocation3 + $0x4e8] sm:$0xff]
    %v1024 = vld [vmem:[#allocation3 + $0x4f0] sm:$0xff]
    %v1025 = vld [vmem:[#allocation3 + $0x4f8] sm:$0xff]
    %v1026 = vld [vmem:[#allocation3 + $0x500] sm:$0xff]
    %v1027 = vld [vmem:[#allocation3 + $0x508] sm:$0xff]
    %v1028 = vld [vmem:[#allocation3 + $0x510] sm:$0xff]
    %v1029 = vld [vmem:[#allocation3 + $0x518] sm:$0xff]
    %v1030 = vld [vmem:[#allocation3 + $0x520] sm:$0xff]
    %v1031 = vld [vmem:[#allocation3 + $0x528] sm:$0xff]
    %v1032 = vld [vmem:[#allocation3 + $0x530] sm:$0xff]
    %v1033 = vld [vmem:[#allocation3 + $0x538] sm:$0xff]
    %v1034 = vld [vmem:[#allocation3 + $0x540] sm:$0xff]
    %v1035 = vld [vmem:[#allocation3 + $0x548] sm:$0xff]
    %v1036 = vld [vmem:[#allocation3 + $0x550] sm:$0xff]
    %v1037 = vld [vmem:[#allocation3 + $0x558] sm:$0xff]
    %v1038 = vld [vmem:[#allocation3 + $0x560] sm:$0xff]
    %v1039 = vld [vmem:[#allocation3 + $0x568] sm:$0xff]
    %v1040 = vld [vmem:[#allocation3 + $0x570] sm:$0xff]
    %v1041 = vld [vmem:[#allocation3 + $0x578] sm:$0xff]
    %v1042 = vld [vmem:[#allocation3 + $0x580] sm:$0xff]
    %v1043 = vld [vmem:[#allocation3 + $0x588] sm:$0xff]
    %v1044 = vld [vmem:[#allocation3 + $0x590] sm:$0xff]
    %v1045 = vld [vmem:[#allocation3 + $0x598] sm:$0xff]
    %v1046 = vld [vmem:[#allocation3 + $0x5a0] sm:$0xff]
    %v1047 = vld [vmem:[#allocation3 + $0x5a8] sm:$0xff]
    %v1048 = vld [vmem:[#allocation3 + $0x5b0] sm:$0xff]
    %v1049 = vld [vmem:[#allocation3 + $0x5b8] sm:$0xff]
    %v1050 = vld [vmem:[#allocation3 + $0x5c0] sm:$0xff]
    %v1051 = vld [vmem:[#allocation3 + $0x5c8] sm:$0xff]
    %v1052 = vld [vmem:[#allocation3 + $0x5d0] sm:$0xff]
    %v1053 = vld [vmem:[#allocation3 + $0x5d8] sm:$0xff]
    %v1054 = vld [vmem:[#allocation3 + $0x5e0] sm:$0xff]
    %v1055 = vld [vmem:[#allocation3 + $0x5e8] sm:$0xff]
    %v1056 = vld [vmem:[#allocation3 + $0x5f0] sm:$0xff]
    %v1057 = vld [vmem:[#allocation3 + $0x5f8] sm:$0xff]
    %v1058 = vld [vmem:[#allocation3 + $0x600] sm:$0xff]
    %v1059 = vld [vmem:[#allocation3 + $0x608] sm:$0xff]
    %v1060 = vld [vmem:[#allocation3 + $0x610] sm:$0xff]
    %v1061 = vld [vmem:[#allocation3 + $0x618] sm:$0xff]
    %v1062 = vld [vmem:[#allocation3 + $0x620] sm:$0xff]
    %v1063 = vld [vmem:[#allocation3 + $0x628] sm:$0xff]
    %v1064 = vld [vmem:[#allocation3 + $0x630] sm:$0xff]
    %v1065 = vld [vmem:[#allocation3 + $0x638] sm:$0xff]
    %v1066 = vld [vmem:[#allocation3 + $0x640] sm:$0xff]
    %v1067 = vld [vmem:[#allocation3 + $0x648] sm:$0xff]
    %v1068 = vld [vmem:[#allocation3 + $0x650] sm:$0xff]
    %v1069 = vld [vmem:[#allocation3 + $0x658] sm:$0xff]
    %v1070 = vld [vmem:[#allocation3 + $0x660] sm:$0xff]
    %v1071 = vld [vmem:[#allocation3 + $0x668] sm:$0xff]
    %v1072 = vld [vmem:[#allocation3 + $0x670] sm:$0xff]
    %v1073 = vld [vmem:[#allocation3 + $0x678] sm:$0xff]
    %v1074 = vld [vmem:[#allocation3 + $0x680] sm:$0xff]
    %v1075 = vld [vmem:[#allocation3 + $0x688] sm:$0xff]
    %v1076 = vld [vmem:[#allocation3 + $0x690] sm:$0xff]
    %v1077 = vld [vmem:[#allocation3 + $0x698] sm:$0xff]
    %v1078 = vld [vmem:[#allocation3 + $0x6a0] sm:$0xff]
    %v1079 = vld [vmem:[#allocation3 + $0x6a8] sm:$0xff]
    %v1080 = vld [vmem:[#allocation3 + $0x6b0] sm:$0xff]
    %v1081 = vld [vmem:[#allocation3 + $0x6b8] sm:$0xff]
    %v1082 = vld [vmem:[#allocation3 + $0x6c0] sm:$0xff]
    %v1083 = vld [vmem:[#allocation3 + $0x6c8] sm:$0xff]
    %v1084 = vld [vmem:[#allocation3 + $0x6d0] sm:$0xff]
    %v1085 = vld [vmem:[#allocation3 + $0x6d8] sm:$0xff]
    %v1086 = vld [vmem:[#allocation3 + $0x6e0] sm:$0xff]
    %v1087 = vld [vmem:[#allocation3 + $0x6e8] sm:$0xff]
    %v1088 = vld [vmem:[#allocation3 + $0x6f0] sm:$0xff]
    %v1089 = vld [vmem:[#allocation3 + $0x6f8] sm:$0xff]
    %v1090 = vld [vmem:[#allocation3 + $0x700] sm:$0xff]
    %v1091 = vld [vmem:[#allocation3 + $0x708] sm:$0xff]
    %v1092 = vld [vmem:[#allocation3 + $0x710] sm:$0xff]
    %v1093 = vld [vmem:[#allocation3 + $0x718] sm:$0xff]
    %v1094 = vld [vmem:[#allocation3 + $0x720] sm:$0xff]
    %v1095 = vld [vmem:[#allocation3 + $0x728] sm:$0xff]
    %v1096 = vld [vmem:[#allocation3 + $0x730] sm:$0xff]
    %v1097 = vld [vmem:[#allocation3 + $0x738] sm:$0xff]
    %v1098 = vld [vmem:[#allocation3 + $0x740] sm:$0xff]
    %v1099 = vld [vmem:[#allocation3 + $0x748] sm:$0xff]
    %v1100 = vld [vmem:[#allocation3 + $0x750] sm:$0xff]
    %v1101 = vld [vmem:[#allocation3 + $0x758] sm:$0xff]
    %v1102 = vld [vmem:[#allocation3 + $0x760] sm:$0xff]
    %v1103 = vld [vmem:[#allocation3 + $0x768] sm:$0xff]
    %v1104 = vld [vmem:[#allocation3 + $0x770] sm:$0xff]
    %v1105 = vld [vmem:[#allocation3 + $0x778] sm:$0xff]
    %v1106 = vld [vmem:[#allocation3 + $0x780] sm:$0xff]
    %v1107 = vld [vmem:[#allocation3 + $0x788] sm:$0xff]
    %v1108 = vld [vmem:[#allocation3 + $0x790] sm:$0xff]
    %v1109 = vld [vmem:[#allocation3 + $0x798] sm:$0xff]
    %v1110 = vld [vmem:[#allocation3 + $0x7a0] sm:$0xff]
    %v1111 = vld [vmem:[#allocation3 + $0x7a8] sm:$0xff]
    %v1112 = vld [vmem:[#allocation3 + $0x7b0] sm:$0xff]
    %v1113 = vld [vmem:[#allocation3 + $0x7b8] sm:$0xff]
    %v1114 = vld [vmem:[#allocation3 + $0x7c0] sm:$0xff]
    %v1115 = vld [vmem:[#allocation3 + $0x7c8] sm:$0xff]
    %v1116 = vld [vmem:[#allocation3 + $0x7d0] sm:$0xff]
    %v1117 = vld [vmem:[#allocation3 + $0x7d8] sm:$0xff]
    %v1118 = vld [vmem:[#allocation3 + $0x7e0] sm:$0xff]
    %v1119 = vld [vmem:[#allocation3 + $0x7e8] sm:$0xff]
    %v1120 = vld [vmem:[#allocation3 + $0x7f0] sm:$0xff]
    %v1121 = vld [vmem:[#allocation3 + $0x7f8] sm:$0xff]
    %v1378 = vunpack.c.l.b16 %v866
    %v1379 = vunpack.c.h.b16 %v866
    %v1380 = vunpack.c.l.b16 %v867
    %v1381 = vunpack.c.h.b16 %v867
    %v1382 = vunpack.c.l.b16 %v868
    %v1383 = vunpack.c.h.b16 %v868
    %v1384 = vunpack.c.l.b16 %v869
    %v1385 = vunpack.c.h.b16 %v869
    %v1386 = vunpack.c.l.b16 %v870
    %v1387 = vunpack.c.h.b16 %v870
    %v1388 = vunpack.c.l.b16 %v871
    %v1389 = vunpack.c.h.b16 %v871
    %v1390 = vunpack.c.l.b16 %v872
    %v1391 = vunpack.c.h.b16 %v872
    %v1392 = vunpack.c.l.b16 %v873
    %v1393 = vunpack.c.h.b16 %v873
    %v1394 = vunpack.c.l.b16 %v874
    %v1395 = vunpack.c.h.b16 %v874
    %v1396 = vunpack.c.l.b16 %v875
    %v1397 = vunpack.c.h.b16 %v875
    %v1398 = vunpack.c.l.b16 %v876
    %v1399 = vunpack.c.h.b16 %v876
    %v1400 = vunpack.c.l.b16 %v877
    %v1401 = vunpack.c.h.b16 %v877
    %v1402 = vunpack.c.l.b16 %v878
    %v1403 = vunpack.c.h.b16 %v878
    %v1404 = vunpack.c.l.b16 %v879
    %v1405 = vunpack.c.h.b16 %v879
    %v1406 = vunpack.c.l.b16 %v880
    %v1407 = vunpack.c.h.b16 %v880
    %v1408 = vunpack.c.l.b16 %v881
    %v1409 = vunpack.c.h.b16 %v881
    %v1410 = vunpack.c.l.b16 %v882
    %v1411 = vunpack.c.h.b16 %v882
    %v1412 = vunpack.c.l.b16 %v883
    %v1413 = vunpack.c.h.b16 %v883
    %v1414 = vunpack.c.l.b16 %v884
    %v1415 = vunpack.c.h.b16 %v884
    %v1416 = vunpack.c.l.b16 %v885
    %v1417 = vunpack.c.h.b16 %v885
    %v1418 = vunpack.c.l.b16 %v886
    %v1419 = vunpack.c.h.b16 %v886
    %v1420 = vunpack.c.l.b16 %v887
    %v1421 = vunpack.c.h.b16 %v887
    %v1422 = vunpack.c.l.b16 %v888
    %v1423 = vunpack.c.h.b16 %v888
    %v1424 = vunpack.c.l.b16 %v889
    %v1425 = vunpack.c.h.b16 %v889
    %v1426 = vunpack.c.l.b16 %v890
    %v1427 = vunpack.c.h.b16 %v890
    %v1428 = vunpack.c.l.b16 %v891
    %v1429 = vunpack.c.h.b16 %v891
    %v1430 = vunpack.c.l.b16 %v892
    %v1431 = vunpack.c.h.b16 %v892
    %v1432 = vunpack.c.l.b16 %v893
    %v1433 = vunpack.c.h.b16 %v893
    %v1434 = vunpack.c.l.b16 %v894
    %v1435 = vunpack.c.h.b16 %v894
    %v1436 = vunpack.c.l.b16 %v895
    %v1437 = vunpack.c.h.b16 %v895
    %v1438 = vunpack.c.l.b16 %v896
    %v1439 = vunpack.c.h.b16 %v896
    %v1440 = vunpack.c.l.b16 %v897
    %v1441 = vunpack.c.h.b16 %v897
    %v1442 = vunpack.c.l.b16 %v898
    %v1443 = vunpack.c.h.b16 %v898
    %v1444 = vunpack.c.l.b16 %v899
    %v1445 = vunpack.c.h.b16 %v899
    %v1446 = vunpack.c.l.b16 %v900
    %v1447 = vunpack.c.h.b16 %v900
    %v1448 = vunpack.c.l.b16 %v901
    %v1449 = vunpack.c.h.b16 %v901
    %v1450 = vunpack.c.l.b16 %v902
    %v1451 = vunpack.c.h.b16 %v902
    %v1452 = vunpack.c.l.b16 %v903
    %v1453 = vunpack.c.h.b16 %v903
    %v1454 = vunpack.c.l.b16 %v904
    %v1455 = vunpack.c.h.b16 %v904
    %v1456 = vunpack.c.l.b16 %v905
    %v1457 = vunpack.c.h.b16 %v905
    %v1458 = vunpack.c.l.b16 %v906
    %v1459 = vunpack.c.h.b16 %v906
    %v1460 = vunpack.c.l.b16 %v907
    %v1461 = vunpack.c.h.b16 %v907
    %v1462 = vunpack.c.l.b16 %v908
    %v1463 = vunpack.c.h.b16 %v908
    %v1464 = vunpack.c.l.b16 %v909
    %v1465 = vunpack.c.h.b16 %v909
    %v1466 = vunpack.c.l.b16 %v910
    %v1467 = vunpack.c.h.b16 %v910
    %v1468 = vunpack.c.l.b16 %v911
    %v1469 = vunpack.c.h.b16 %v911
    %v1470 = vunpack.c.l.b16 %v912
    %v1471 = vunpack.c.h.b16 %v912
    %v1472 = vunpack.c.l.b16 %v913
    %v1473 = vunpack.c.h.b16 %v913
    %v1474 = vunpack.c.l.b16 %v914
    %v1475 = vunpack.c.h.b16 %v914
    %v1476 = vunpack.c.l.b16 %v915
    %v1477 = vunpack.c.h.b16 %v915
    %v1478 = vunpack.c.l.b16 %v916
    %v1479 = vunpack.c.h.b16 %v916
    %v1480 = vunpack.c.l.b16 %v917
    %v1481 = vunpack.c.h.b16 %v917
    %v1482 = vunpack.c.l.b16 %v918
    %v1483 = vunpack.c.h.b16 %v918
    %v1484 = vunpack.c.l.b16 %v919
    %v1485 = vunpack.c.h.b16 %v919
    %v1486 = vunpack.c.l.b16 %v920
    %v1487 = vunpack.c.h.b16 %v920
    %v1488 = vunpack.c.l.b16 %v921
    %v1489 = vunpack.c.h.b16 %v921
    %v1490 = vunpack.c.l.b16 %v922
    %v1491 = vunpack.c.h.b16 %v922
    %v1492 = vunpack.c.l.b16 %v923
    %v1493 = vunpack.c.h.b16 %v923
    %v1494 = vunpack.c.l.b16 %v924
    %v1495 = vunpack.c.h.b16 %v924
    %v1496 = vunpack.c.l.b16 %v925
    %v1497 = vunpack.c.h.b16 %v925
    %v1498 = vunpack.c.l.b16 %v926
    %v1499 = vunpack.c.h.b16 %v926
    %v1500 = vunpack.c.l.b16 %v927
    %v1501 = vunpack.c.h.b16 %v927
    %v1502 = vunpack.c.l.b16 %v928
    %v1503 = vunpack.c.h.b16 %v928
    %v1504 = vunpack.c.l.b16 %v929
    %v1505 = vunpack.c.h.b16 %v929
    %v1506 = vunpack.c.l.b16 %v930
    %v1507 = vunpack.c.h.b16 %v930
    %v1508 = vunpack.c.l.b16 %v931
    %v1509 = vunpack.c.h.b16 %v931
    %v1510 = vunpack.c.l.b16 %v932
    %v1511 = vunpack.c.h.b16 %v932
    %v1512 = vunpack.c.l.b16 %v933
    %v1513 = vunpack.c.h.b16 %v933
    %v1514 = vunpack.c.l.b16 %v934
    %v1515 = vunpack.c.h.b16 %v934
    %v1516 = vunpack.c.l.b16 %v935
    %v1517 = vunpack.c.h.b16 %v935
    %v1518 = vunpack.c.l.b16 %v936
    %v1519 = vunpack.c.h.b16 %v936
    %v1520 = vunpack.c.l.b16 %v937
    %v1521 = vunpack.c.h.b16 %v937
    %v1522 = vunpack.c.l.b16 %v938
    %v1523 = vunpack.c.h.b16 %v938
    %v1524 = vunpack.c.l.b16 %v939
    %v1525 = vunpack.c.h.b16 %v939
    %v1526 = vunpack.c.l.b16 %v940
    %v1527 = vunpack.c.h.b16 %v940
    %v1528 = vunpack.c.l.b16 %v941
    %v1529 = vunpack.c.h.b16 %v941
    %v1530 = vunpack.c.l.b16 %v942
    %v1531 = vunpack.c.h.b16 %v942
    %v1532 = vunpack.c.l.b16 %v943
    %v1533 = vunpack.c.h.b16 %v943
    %v1534 = vunpack.c.l.b16 %v944
    %v1535 = vunpack.c.h.b16 %v944
    %v1536 = vunpack.c.l.b16 %v945
    %v1537 = vunpack.c.h.b16 %v945
    %v1538 = vunpack.c.l.b16 %v946
    %v1539 = vunpack.c.h.b16 %v946
    %v1540 = vunpack.c.l.b16 %v947
    %v1541 = vunpack.c.h.b16 %v947
    %v1542 = vunpack.c.l.b16 %v948
    %v1543 = vunpack.c.h.b16 %v948
    %v1544 = vunpack.c.l.b16 %v949
    %v1545 = vunpack.c.h.b16 %v949
    %v1546 = vunpack.c.l.b16 %v950
    %v1547 = vunpack.c.h.b16 %v950
    %v1548 = vunpack.c.l.b16 %v951
    %v1549 = vunpack.c.h.b16 %v951
    %v1550 = vunpack.c.l.b16 %v952
    %v1551 = vunpack.c.h.b16 %v952
    %v1552 = vunpack.c.l.b16 %v953
    %v1553 = vunpack.c.h.b16 %v953
    %v1554 = vunpack.c.l.b16 %v954
    %v1555 = vunpack.c.h.b16 %v954
    %v1556 = vunpack.c.l.b16 %v955
    %v1557 = vunpack.c.h.b16 %v955
    %v1558 = vunpack.c.l.b16 %v956
    %v1559 = vunpack.c.h.b16 %v956
    %v1560 = vunpack.c.l.b16 %v957
    %v1561 = vunpack.c.h.b16 %v957
    %v1562 = vunpack.c.l.b16 %v958
    %v1563 = vunpack.c.h.b16 %v958
    %v1564 = vunpack.c.l.b16 %v959
    %v1565 = vunpack.c.h.b16 %v959
    %v1566 = vunpack.c.l.b16 %v960
    %v1567 = vunpack.c.h.b16 %v960
    %v1568 = vunpack.c.l.b16 %v961
    %v1569 = vunpack.c.h.b16 %v961
    %v1570 = vunpack.c.l.b16 %v962
    %v1571 = vunpack.c.h.b16 %v962
    %v1572 = vunpack.c.l.b16 %v963
    %v1573 = vunpack.c.h.b16 %v963
    %v1574 = vunpack.c.l.b16 %v964
    %v1575 = vunpack.c.h.b16 %v964
    %v1576 = vunpack.c.l.b16 %v965
    %v1577 = vunpack.c.h.b16 %v965
    %v1578 = vunpack.c.l.b16 %v966
    %v1579 = vunpack.c.h.b16 %v966
    %v1580 = vunpack.c.l.b16 %v967
    %v1581 = vunpack.c.h.b16 %v967
    %v1582 = vunpack.c.l.b16 %v968
    %v1583 = vunpack.c.h.b16 %v968
    %v1584 = vunpack.c.l.b16 %v969
    %v1585 = vunpack.c.h.b16 %v969
    %v1586 = vunpack.c.l.b16 %v970
    %v1587 = vunpack.c.h.b16 %v970
    %v1588 = vunpack.c.l.b16 %v971
    %v1589 = vunpack.c.h.b16 %v971
    %v1590 = vunpack.c.l.b16 %v972
    %v1591 = vunpack.c.h.b16 %v972
    %v1592 = vunpack.c.l.b16 %v973
    %v1593 = vunpack.c.h.b16 %v973
    %v1594 = vunpack.c.l.b16 %v974
    %v1595 = vunpack.c.h.b16 %v974
    %v1596 = vunpack.c.l.b16 %v975
    %v1597 = vunpack.c.h.b16 %v975
    %v1598 = vunpack.c.l.b16 %v976
    %v1599 = vunpack.c.h.b16 %v976
    %v1600 = vunpack.c.l.b16 %v977
    %v1601 = vunpack.c.h.b16 %v977
    %v1602 = vunpack.c.l.b16 %v978
    %v1603 = vunpack.c.h.b16 %v978
    %v1604 = vunpack.c.l.b16 %v979
    %v1605 = vunpack.c.h.b16 %v979
    %v1606 = vunpack.c.l.b16 %v980
    %v1607 = vunpack.c.h.b16 %v980
    %v1608 = vunpack.c.l.b16 %v981
    %v1609 = vunpack.c.h.b16 %v981
    %v1610 = vunpack.c.l.b16 %v982
    %v1611 = vunpack.c.h.b16 %v982
    %v1612 = vunpack.c.l.b16 %v983
    %v1613 = vunpack.c.h.b16 %v983
    %v1614 = vunpack.c.l.b16 %v984
    %v1615 = vunpack.c.h.b16 %v984
    %v1616 = vunpack.c.l.b16 %v985
    %v1617 = vunpack.c.h.b16 %v985
    %v1618 = vunpack.c.l.b16 %v986
    %v1619 = vunpack.c.h.b16 %v986
    %v1620 = vunpack.c.l.b16 %v987
    %v1621 = vunpack.c.h.b16 %v987
    %v1622 = vunpack.c.l.b16 %v988
    %v1623 = vunpack.c.h.b16 %v988
    %v1624 = vunpack.c.l.b16 %v989
    %v1625 = vunpack.c.h.b16 %v989
    %v1626 = vunpack.c.l.b16 %v990
    %v1627 = vunpack.c.h.b16 %v990
    %v1628 = vunpack.c.l.b16 %v991
    %v1629 = vunpack.c.h.b16 %v991
    %v1630 = vunpack.c.l.b16 %v992
    %v1631 = vunpack.c.h.b16 %v992
    %v1632 = vunpack.c.l.b16 %v993
    %v1633 = vunpack.c.h.b16 %v993
    %v1634 = vunpack.c.l.b16 %v994
    %v1635 = vunpack.c.h.b16 %v994
    %v1636 = vunpack.c.l.b16 %v995
    %v1637 = vunpack.c.h.b16 %v995
    %v1638 = vunpack.c.l.b16 %v996
    %v1639 = vunpack.c.h.b16 %v996
    %v1640 = vunpack.c.l.b16 %v997
    %v1641 = vunpack.c.h.b16 %v997
    %v1642 = vunpack.c.l.b16 %v998
    %v1643 = vunpack.c.h.b16 %v998
    %v1644 = vunpack.c.l.b16 %v999
    %v1645 = vunpack.c.h.b16 %v999
    %v1646 = vunpack.c.l.b16 %v1000
    %v1647 = vunpack.c.h.b16 %v1000
    %v1648 = vunpack.c.l.b16 %v1001
    %v1649 = vunpack.c.h.b16 %v1001
    %v1650 = vunpack.c.l.b16 %v1002
    %v1651 = vunpack.c.h.b16 %v1002
    %v1652 = vunpack.c.l.b16 %v1003
    %v1653 = vunpack.c.h.b16 %v1003
    %v1654 = vunpack.c.l.b16 %v1004
    %v1655 = vunpack.c.h.b16 %v1004
    %v1656 = vunpack.c.l.b16 %v1005
    %v1657 = vunpack.c.h.b16 %v1005
    %v1658 = vunpack.c.l.b16 %v1006
    %v1659 = vunpack.c.h.b16 %v1006
    %v1660 = vunpack.c.l.b16 %v1007
    %v1661 = vunpack.c.h.b16 %v1007
    %v1662 = vunpack.c.l.b16 %v1008
    %v1663 = vunpack.c.h.b16 %v1008
    %v1664 = vunpack.c.l.b16 %v1009
    %v1665 = vunpack.c.h.b16 %v1009
    %v1666 = vunpack.c.l.b16 %v1010
    %v1667 = vunpack.c.h.b16 %v1010
    %v1668 = vunpack.c.l.b16 %v1011
    %v1669 = vunpack.c.h.b16 %v1011
    %v1670 = vunpack.c.l.b16 %v1012
    %v1671 = vunpack.c.h.b16 %v1012
    %v1672 = vunpack.c.l.b16 %v1013
    %v1673 = vunpack.c.h.b16 %v1013
    %v1674 = vunpack.c.l.b16 %v1014
    %v1675 = vunpack.c.h.b16 %v1014
    %v1676 = vunpack.c.l.b16 %v1015
    %v1677 = vunpack.c.h.b16 %v1015
    %v1678 = vunpack.c.l.b16 %v1016
    %v1679 = vunpack.c.h.b16 %v1016
    %v1680 = vunpack.c.l.b16 %v1017
    %v1681 = vunpack.c.h.b16 %v1017
    %v1682 = vunpack.c.l.b16 %v1018
    %v1683 = vunpack.c.h.b16 %v1018
    %v1684 = vunpack.c.l.b16 %v1019
    %v1685 = vunpack.c.h.b16 %v1019
    %v1686 = vunpack.c.l.b16 %v1020
    %v1687 = vunpack.c.h.b16 %v1020
    %v1688 = vunpack.c.l.b16 %v1021
    %v1689 = vunpack.c.h.b16 %v1021
    %v1690 = vunpack.c.l.b16 %v1022
    %v1691 = vunpack.c.h.b16 %v1022
    %v1692 = vunpack.c.l.b16 %v1023
    %v1693 = vunpack.c.h.b16 %v1023
    %v1694 = vunpack.c.l.b16 %v1024
    %v1695 = vunpack.c.h.b16 %v1024
    %v1696 = vunpack.c.l.b16 %v1025
    %v1697 = vunpack.c.h.b16 %v1025
    %v1698 = vunpack.c.l.b16 %v1026
    %v1699 = vunpack.c.h.b16 %v1026
    %v1700 = vunpack.c.l.b16 %v1027
    %v1701 = vunpack.c.h.b16 %v1027
    %v1702 = vunpack.c.l.b16 %v1028
    %v1703 = vunpack.c.h.b16 %v1028
    %v1704 = vunpack.c.l.b16 %v1029
    %v1705 = vunpack.c.h.b16 %v1029
    %v1706 = vunpack.c.l.b16 %v1030
    %v1707 = vunpack.c.h.b16 %v1030
    %v1708 = vunpack.c.l.b16 %v1031
    %v1709 = vunpack.c.h.b16 %v1031
    %v1710 = vunpack.c.l.b16 %v1032
    %v1711 = vunpack.c.h.b16 %v1032
    %v1712 = vunpack.c.l.b16 %v1033
    %v1713 = vunpack.c.h.b16 %v1033
    %v1714 = vunpack.c.l.b16 %v1034
    %v1715 = vunpack.c.h.b16 %v1034
    %v1716 = vunpack.c.l.b16 %v1035
    %v1717 = vunpack.c.h.b16 %v1035
    %v1718 = vunpack.c.l.b16 %v1036
    %v1719 = vunpack.c.h.b16 %v1036
    %v1720 = vunpack.c.l.b16 %v1037
    %v1721 = vunpack.c.h.b16 %v1037
    %v1722 = vunpack.c.l.b16 %v1038
    %v1723 = vunpack.c.h.b16 %v1038
    %v1724 = vunpack.c.l.b16 %v1039
    %v1725 = vunpack.c.h.b16 %v1039
    %v1726 = vunpack.c.l.b16 %v1040
    %v1727 = vunpack.c.h.b16 %v1040
    %v1728 = vunpack.c.l.b16 %v1041
    %v1729 = vunpack.c.h.b16 %v1041
    %v1730 = vunpack.c.l.b16 %v1042
    %v1731 = vunpack.c.h.b16 %v1042
    %v1732 = vunpack.c.l.b16 %v1043
    %v1733 = vunpack.c.h.b16 %v1043
    %v1734 = vunpack.c.l.b16 %v1044
    %v1735 = vunpack.c.h.b16 %v1044
    %v1736 = vunpack.c.l.b16 %v1045
    %v1737 = vunpack.c.h.b16 %v1045
    %v1738 = vunpack.c.l.b16 %v1046
    %v1739 = vunpack.c.h.b16 %v1046
    %v1740 = vunpack.c.l.b16 %v1047
    %v1741 = vunpack.c.h.b16 %v1047
    %v1742 = vunpack.c.l.b16 %v1048
    %v1743 = vunpack.c.h.b16 %v1048
    %v1744 = vunpack.c.l.b16 %v1049
    %v1745 = vunpack.c.h.b16 %v1049
    %v1746 = vunpack.c.l.b16 %v1050
    %v1747 = vunpack.c.h.b16 %v1050
    %v1748 = vunpack.c.l.b16 %v1051
    %v1749 = vunpack.c.h.b16 %v1051
    %v1750 = vunpack.c.l.b16 %v1052
    %v1751 = vunpack.c.h.b16 %v1052
    %v1752 = vunpack.c.l.b16 %v1053
    %v1753 = vunpack.c.h.b16 %v1053
    %v1754 = vunpack.c.l.b16 %v1054
    %v1755 = vunpack.c.h.b16 %v1054
    %v1756 = vunpack.c.l.b16 %v1055
    %v1757 = vunpack.c.h.b16 %v1055
    %v1758 = vunpack.c.l.b16 %v1056
    %v1759 = vunpack.c.h.b16 %v1056
    %v1760 = vunpack.c.l.b16 %v1057
    %v1761 = vunpack.c.h.b16 %v1057
    %v1762 = vunpack.c.l.b16 %v1058
    %v1763 = vunpack.c.h.b16 %v1058
    %v1764 = vunpack.c.l.b16 %v1059
    %v1765 = vunpack.c.h.b16 %v1059
    %v1766 = vunpack.c.l.b16 %v1060
    %v1767 = vunpack.c.h.b16 %v1060
    %v1768 = vunpack.c.l.b16 %v1061
    %v1769 = vunpack.c.h.b16 %v1061
    %v1770 = vunpack.c.l.b16 %v1062
    %v1771 = vunpack.c.h.b16 %v1062
    %v1772 = vunpack.c.l.b16 %v1063
    %v1773 = vunpack.c.h.b16 %v1063
    %v1774 = vunpack.c.l.b16 %v1064
    %v1775 = vunpack.c.h.b16 %v1064
    %v1776 = vunpack.c.l.b16 %v1065
    %v1777 = vunpack.c.h.b16 %v1065
    %v1778 = vunpack.c.l.b16 %v1066
    %v1779 = vunpack.c.h.b16 %v1066
    %v1780 = vunpack.c.l.b16 %v1067
    %v1781 = vunpack.c.h.b16 %v1067
    %v1782 = vunpack.c.l.b16 %v1068
    %v1783 = vunpack.c.h.b16 %v1068
    %v1784 = vunpack.c.l.b16 %v1069
    %v1785 = vunpack.c.h.b16 %v1069
    %v1786 = vunpack.c.l.b16 %v1070
    %v1787 = vunpack.c.h.b16 %v1070
    %v1788 = vunpack.c.l.b16 %v1071
    %v1789 = vunpack.c.h.b16 %v1071
    %v1790 = vunpack.c.l.b16 %v1072
    %v1791 = vunpack.c.h.b16 %v1072
    %v1792 = vunpack.c.l.b16 %v1073
    %v1793 = vunpack.c.h.b16 %v1073
    %v1794 = vunpack.c.l.b16 %v1074
    %v1795 = vunpack.c.h.b16 %v1074
    %v1796 = vunpack.c.l.b16 %v1075
    %v1797 = vunpack.c.h.b16 %v1075
    %v1798 = vunpack.c.l.b16 %v1076
    %v1799 = vunpack.c.h.b16 %v1076
    %v1800 = vunpack.c.l.b16 %v1077
    %v1801 = vunpack.c.h.b16 %v1077
    %v1802 = vunpack.c.l.b16 %v1078
    %v1803 = vunpack.c.h.b16 %v1078
    %v1804 = vunpack.c.l.b16 %v1079
    %v1805 = vunpack.c.h.b16 %v1079
    %v1806 = vunpack.c.l.b16 %v1080
    %v1807 = vunpack.c.h.b16 %v1080
    %v1808 = vunpack.c.l.b16 %v1081
    %v1809 = vunpack.c.h.b16 %v1081
    %v1810 = vunpack.c.l.b16 %v1082
    %v1811 = vunpack.c.h.b16 %v1082
    %v1812 = vunpack.c.l.b16 %v1083
    %v1813 = vunpack.c.h.b16 %v1083
    %v1814 = vunpack.c.l.b16 %v1084
    %v1815 = vunpack.c.h.b16 %v1084
    %v1816 = vunpack.c.l.b16 %v1085
    %v1817 = vunpack.c.h.b16 %v1085
    %v1818 = vunpack.c.l.b16 %v1086
    %v1819 = vunpack.c.h.b16 %v1086
    %v1820 = vunpack.c.l.b16 %v1087
    %v1821 = vunpack.c.h.b16 %v1087
    %v1822 = vunpack.c.l.b16 %v1088
    %v1823 = vunpack.c.h.b16 %v1088
    %v1824 = vunpack.c.l.b16 %v1089
    %v1825 = vunpack.c.h.b16 %v1089
    %v1826 = vunpack.c.l.b16 %v1090
    %v1827 = vunpack.c.h.b16 %v1090
    %v1828 = vunpack.c.l.b16 %v1091
    %v1829 = vunpack.c.h.b16 %v1091
    %v1830 = vunpack.c.l.b16 %v1092
    %v1831 = vunpack.c.h.b16 %v1092
    %v1832 = vunpack.c.l.b16 %v1093
    %v1833 = vunpack.c.h.b16 %v1093
    %v1834 = vunpack.c.l.b16 %v1094
    %v1835 = vunpack.c.h.b16 %v1094
    %v1836 = vunpack.c.l.b16 %v1095
    %v1837 = vunpack.c.h.b16 %v1095
    %v1838 = vunpack.c.l.b16 %v1096
    %v1839 = vunpack.c.h.b16 %v1096
    %v1840 = vunpack.c.l.b16 %v1097
    %v1841 = vunpack.c.h.b16 %v1097
    %v1842 = vunpack.c.l.b16 %v1098
    %v1843 = vunpack.c.h.b16 %v1098
    %v1844 = vunpack.c.l.b16 %v1099
    %v1845 = vunpack.c.h.b16 %v1099
    %v1846 = vunpack.c.l.b16 %v1100
    %v1847 = vunpack.c.h.b16 %v1100
    %v1848 = vunpack.c.l.b16 %v1101
    %v1849 = vunpack.c.h.b16 %v1101
    %v1850 = vunpack.c.l.b16 %v1102
    %v1851 = vunpack.c.h.b16 %v1102
    %v1852 = vunpack.c.l.b16 %v1103
    %v1853 = vunpack.c.h.b16 %v1103
    %v1854 = vunpack.c.l.b16 %v1104
    %v1855 = vunpack.c.h.b16 %v1104
    %v1856 = vunpack.c.l.b16 %v1105
    %v1857 = vunpack.c.h.b16 %v1105
    %v1858 = vunpack.c.l.b16 %v1106
    %v1859 = vunpack.c.h.b16 %v1106
    %v1860 = vunpack.c.l.b16 %v1107
    %v1861 = vunpack.c.h.b16 %v1107
    %v1862 = vunpack.c.l.b16 %v1108
    %v1863 = vunpack.c.h.b16 %v1108
    %v1864 = vunpack.c.l.b16 %v1109
    %v1865 = vunpack.c.h.b16 %v1109
    %v1866 = vunpack.c.l.b16 %v1110
    %v1867 = vunpack.c.h.b16 %v1110
    %v1868 = vunpack.c.l.b16 %v1111
    %v1869 = vunpack.c.h.b16 %v1111
    %v1870 = vunpack.c.l.b16 %v1112
    %v1871 = vunpack.c.h.b16 %v1112
    %v1872 = vunpack.c.l.b16 %v1113
    %v1873 = vunpack.c.h.b16 %v1113
    %v1874 = vunpack.c.l.b16 %v1114
    %v1875 = vunpack.c.h.b16 %v1114
    %v1876 = vunpack.c.l.b16 %v1115
    %v1877 = vunpack.c.h.b16 %v1115
    %v1878 = vunpack.c.l.b16 %v1116
    %v1879 = vunpack.c.h.b16 %v1116
    %v1880 = vunpack.c.l.b16 %v1117
    %v1881 = vunpack.c.h.b16 %v1117
    %v1882 = vunpack.c.l.b16 %v1118
    %v1883 = vunpack.c.h.b16 %v1118
    %v1884 = vunpack.c.l.b16 %v1119
    %v1885 = vunpack.c.h.b16 %v1119
    %v1886 = vunpack.c.l.b16 %v1120
    %v1887 = vunpack.c.h.b16 %v1120
    %v1888 = vunpack.c.l.b16 %v1121
    %v1889 = vunpack.c.h.b16 %v1121
    %v1890 = vpack.c.b16 %v1380, %v1378
    %v1891 = vpack.c.b16 %v1381, %v1379
    %v1892 = vpack.c.b16 %v1384, %v1382
    %v1893 = vpack.c.b16 %v1385, %v1383
    %v1894 = vpack.c.b16 %v1388, %v1386
    %v1895 = vpack.c.b16 %v1389, %v1387
    %v1896 = vpack.c.b16 %v1392, %v1390
    %v1897 = vpack.c.b16 %v1393, %v1391
    %v1898 = vpack.c.b16 %v1396, %v1394
    %v1899 = vpack.c.b16 %v1397, %v1395
    %v1900 = vpack.c.b16 %v1400, %v1398
    %v1901 = vpack.c.b16 %v1401, %v1399
    %v1902 = vpack.c.b16 %v1404, %v1402
    %v1903 = vpack.c.b16 %v1405, %v1403
    %v1904 = vpack.c.b16 %v1408, %v1406
    %v1905 = vpack.c.b16 %v1409, %v1407
    %v1906 = vpack.c.b16 %v1412, %v1410
    %v1907 = vpack.c.b16 %v1413, %v1411
    %v1908 = vpack.c.b16 %v1416, %v1414
    %v1909 = vpack.c.b16 %v1417, %v1415
    %v1910 = vpack.c.b16 %v1420, %v1418
    %v1911 = vpack.c.b16 %v1421, %v1419
    %v1912 = vpack.c.b16 %v1424, %v1422
    %v1913 = vpack.c.b16 %v1425, %v1423
    %v1914 = vpack.c.b16 %v1428, %v1426
    %v1915 = vpack.c.b16 %v1429, %v1427
    %v1916 = vpack.c.b16 %v1432, %v1430
    %v1917 = vpack.c.b16 %v1433, %v1431
    %v1918 = vpack.c.b16 %v1436, %v1434
    %v1919 = vpack.c.b16 %v1437, %v1435
    %v1920 = vpack.c.b16 %v1440, %v1438
    %v1921 = vpack.c.b16 %v1441, %v1439
    %v1922 = vpack.c.b16 %v1444, %v1442
    %v1923 = vpack.c.b16 %v1445, %v1443
    %v1924 = vpack.c.b16 %v1448, %v1446
    %v1925 = vpack.c.b16 %v1449, %v1447
    %v1926 = vpack.c.b16 %v1452, %v1450
    %v1927 = vpack.c.b16 %v1453, %v1451
    %v1928 = vpack.c.b16 %v1456, %v1454
    %v1929 = vpack.c.b16 %v1457, %v1455
    %v1930 = vpack.c.b16 %v1460, %v1458
    %v1931 = vpack.c.b16 %v1461, %v1459
    %v1932 = vpack.c.b16 %v1464, %v1462
    %v1933 = vpack.c.b16 %v1465, %v1463
    %v1934 = vpack.c.b16 %v1468, %v1466
    %v1935 = vpack.c.b16 %v1469, %v1467
    %v1936 = vpack.c.b16 %v1472, %v1470
    %v1937 = vpack.c.b16 %v1473, %v1471
    %v1938 = vpack.c.b16 %v1476, %v1474
    %v1939 = vpack.c.b16 %v1477, %v1475
    %v1940 = vpack.c.b16 %v1480, %v1478
    %v1941 = vpack.c.b16 %v1481, %v1479
    %v1942 = vpack.c.b16 %v1484, %v1482
    %v1943 = vpack.c.b16 %v1485, %v1483
    %v1944 = vpack.c.b16 %v1488, %v1486
    %v1945 = vpack.c.b16 %v1489, %v1487
    %v1946 = vpack.c.b16 %v1492, %v1490
    %v1947 = vpack.c.b16 %v1493, %v1491
    %v1948 = vpack.c.b16 %v1496, %v1494
    %v1949 = vpack.c.b16 %v1497, %v1495
    %v1950 = vpack.c.b16 %v1500, %v1498
    %v1951 = vpack.c.b16 %v1501, %v1499
    %v1952 = vpack.c.b16 %v1504, %v1502
    %v1953 = vpack.c.b16 %v1505, %v1503
    %v1954 = vpack.c.b16 %v1508, %v1506
    %v1955 = vpack.c.b16 %v1509, %v1507
    %v1956 = vpack.c.b16 %v1512, %v1510
    %v1957 = vpack.c.b16 %v1513, %v1511
    %v1958 = vpack.c.b16 %v1516, %v1514
    %v1959 = vpack.c.b16 %v1517, %v1515
    %v1960 = vpack.c.b16 %v1520, %v1518
    %v1961 = vpack.c.b16 %v1521, %v1519
    %v1962 = vpack.c.b16 %v1524, %v1522
    %v1963 = vpack.c.b16 %v1525, %v1523
    %v1964 = vpack.c.b16 %v1528, %v1526
    %v1965 = vpack.c.b16 %v1529, %v1527
    %v1966 = vpack.c.b16 %v1532, %v1530
    %v1967 = vpack.c.b16 %v1533, %v1531
    %v1968 = vpack.c.b16 %v1536, %v1534
    %v1969 = vpack.c.b16 %v1537, %v1535
    %v1970 = vpack.c.b16 %v1540, %v1538
    %v1971 = vpack.c.b16 %v1541, %v1539
    %v1972 = vpack.c.b16 %v1544, %v1542
    %v1973 = vpack.c.b16 %v1545, %v1543
    %v1974 = vpack.c.b16 %v1548, %v1546
    %v1975 = vpack.c.b16 %v1549, %v1547
    %v1976 = vpack.c.b16 %v1552, %v1550
    %v1977 = vpack.c.b16 %v1553, %v1551
    %v1978 = vpack.c.b16 %v1556, %v1554
    %v1979 = vpack.c.b16 %v1557, %v1555
    %v1980 = vpack.c.b16 %v1560, %v1558
    %v1981 = vpack.c.b16 %v1561, %v1559
    %v1982 = vpack.c.b16 %v1564, %v1562
    %v1983 = vpack.c.b16 %v1565, %v1563
    %v1984 = vpack.c.b16 %v1568, %v1566
    %v1985 = vpack.c.b16 %v1569, %v1567
    %v1986 = vpack.c.b16 %v1572, %v1570
    %v1987 = vpack.c.b16 %v1573, %v1571
    %v1988 = vpack.c.b16 %v1576, %v1574
    %v1989 = vpack.c.b16 %v1577, %v1575
    %v1990 = vpack.c.b16 %v1580, %v1578
    %v1991 = vpack.c.b16 %v1581, %v1579
    %v1992 = vpack.c.b16 %v1584, %v1582
    %v1993 = vpack.c.b16 %v1585, %v1583
    %v1994 = vpack.c.b16 %v1588, %v1586
    %v1995 = vpack.c.b16 %v1589, %v1587
    %v1996 = vpack.c.b16 %v1592, %v1590
    %v1997 = vpack.c.b16 %v1593, %v1591
    %v1998 = vpack.c.b16 %v1596, %v1594
    %v1999 = vpack.c.b16 %v1597, %v1595
    %v2000 = vpack.c.b16 %v1600, %v1598
    %v2001 = vpack.c.b16 %v1601, %v1599
    %v2002 = vpack.c.b16 %v1604, %v1602
    %v2003 = vpack.c.b16 %v1605, %v1603
    %v2004 = vpack.c.b16 %v1608, %v1606
    %v2005 = vpack.c.b16 %v1609, %v1607
    %v2006 = vpack.c.b16 %v1612, %v1610
    %v2007 = vpack.c.b16 %v1613, %v1611
    %v2008 = vpack.c.b16 %v1616, %v1614
    %v2009 = vpack.c.b16 %v1617, %v1615
    %v2010 = vpack.c.b16 %v1620, %v1618
    %v2011 = vpack.c.b16 %v1621, %v1619
    %v2012 = vpack.c.b16 %v1624, %v1622
    %v2013 = vpack.c.b16 %v1625, %v1623
    %v2014 = vpack.c.b16 %v1628, %v1626
    %v2015 = vpack.c.b16 %v1629, %v1627
    %v2016 = vpack.c.b16 %v1632, %v1630
    %v2017 = vpack.c.b16 %v1633, %v1631
    %v2018 = vpack.c.b16 %v1636, %v1634
    %v2019 = vpack.c.b16 %v1637, %v1635
    %v2020 = vpack.c.b16 %v1640, %v1638
    %v2021 = vpack.c.b16 %v1641, %v1639
    %v2022 = vpack.c.b16 %v1644, %v1642
    %v2023 = vpack.c.b16 %v1645, %v1643
    %v2024 = vpack.c.b16 %v1648, %v1646
    %v2025 = vpack.c.b16 %v1649, %v1647
    %v2026 = vpack.c.b16 %v1652, %v1650
    %v2027 = vpack.c.b16 %v1653, %v1651
    %v2028 = vpack.c.b16 %v1656, %v1654
    %v2029 = vpack.c.b16 %v1657, %v1655
    %v2030 = vpack.c.b16 %v1660, %v1658
    %v2031 = vpack.c.b16 %v1661, %v1659
    %v2032 = vpack.c.b16 %v1664, %v1662
    %v2033 = vpack.c.b16 %v1665, %v1663
    %v2034 = vpack.c.b16 %v1668, %v1666
    %v2035 = vpack.c.b16 %v1669, %v1667
    %v2036 = vpack.c.b16 %v1672, %v1670
    %v2037 = vpack.c.b16 %v1673, %v1671
    %v2038 = vpack.c.b16 %v1676, %v1674
    %v2039 = vpack.c.b16 %v1677, %v1675
    %v2040 = vpack.c.b16 %v1680, %v1678
    %v2041 = vpack.c.b16 %v1681, %v1679
    %v2042 = vpack.c.b16 %v1684, %v1682
    %v2043 = vpack.c.b16 %v1685, %v1683
    %v2044 = vpack.c.b16 %v1688, %v1686
    %v2045 = vpack.c.b16 %v1689, %v1687
    %v2046 = vpack.c.b16 %v1692, %v1690
    %v2047 = vpack.c.b16 %v1693, %v1691
    %v2048 = vpack.c.b16 %v1696, %v1694
    %v2049 = vpack.c.b16 %v1697, %v1695
    %v2050 = vpack.c.b16 %v1700, %v1698
    %v2051 = vpack.c.b16 %v1701, %v1699
    %v2052 = vpack.c.b16 %v1704, %v1702
    %v2053 = vpack.c.b16 %v1705, %v1703
    %v2054 = vpack.c.b16 %v1708, %v1706
    %v2055 = vpack.c.b16 %v1709, %v1707
    %v2056 = vpack.c.b16 %v1712, %v1710
    %v2057 = vpack.c.b16 %v1713, %v1711
    %v2058 = vpack.c.b16 %v1716, %v1714
    %v2059 = vpack.c.b16 %v1717, %v1715
    %v2060 = vpack.c.b16 %v1720, %v1718
    %v2061 = vpack.c.b16 %v1721, %v1719
    %v2062 = vpack.c.b16 %v1724, %v1722
    %v2063 = vpack.c.b16 %v1725, %v1723
    %v2064 = vpack.c.b16 %v1728, %v1726
    %v2065 = vpack.c.b16 %v1729, %v1727
    %v2066 = vpack.c.b16 %v1732, %v1730
    %v2067 = vpack.c.b16 %v1733, %v1731
    %v2068 = vpack.c.b16 %v1736, %v1734
    %v2069 = vpack.c.b16 %v1737, %v1735
    %v2070 = vpack.c.b16 %v1740, %v1738
    %v2071 = vpack.c.b16 %v1741, %v1739
    %v2072 = vpack.c.b16 %v1744, %v1742
    %v2073 = vpack.c.b16 %v1745, %v1743
    %v2074 = vpack.c.b16 %v1748, %v1746
    %v2075 = vpack.c.b16 %v1749, %v1747
    %v2076 = vpack.c.b16 %v1752, %v1750
    %v2077 = vpack.c.b16 %v1753, %v1751
    %v2078 = vpack.c.b16 %v1756, %v1754
    %v2079 = vpack.c.b16 %v1757, %v1755
    %v2080 = vpack.c.b16 %v1760, %v1758
    %v2081 = vpack.c.b16 %v1761, %v1759
    %v2082 = vpack.c.b16 %v1764, %v1762
    %v2083 = vpack.c.b16 %v1765, %v1763
    %v2084 = vpack.c.b16 %v1768, %v1766
    %v2085 = vpack.c.b16 %v1769, %v1767
    %v2086 = vpack.c.b16 %v1772, %v1770
    %v2087 = vpack.c.b16 %v1773, %v1771
    %v2088 = vpack.c.b16 %v1776, %v1774
    %v2089 = vpack.c.b16 %v1777, %v1775
    %v2090 = vpack.c.b16 %v1780, %v1778
    %v2091 = vpack.c.b16 %v1781, %v1779
    %v2092 = vpack.c.b16 %v1784, %v1782
    %v2093 = vpack.c.b16 %v1785, %v1783
    %v2094 = vpack.c.b16 %v1788, %v1786
    %v2095 = vpack.c.b16 %v1789, %v1787
    %v2096 = vpack.c.b16 %v1792, %v1790
    %v2097 = vpack.c.b16 %v1793, %v1791
    %v2098 = vpack.c.b16 %v1796, %v1794
    %v2099 = vpack.c.b16 %v1797, %v1795
    %v2100 = vpack.c.b16 %v1800, %v1798
    %v2101 = vpack.c.b16 %v1801, %v1799
    %v2102 = vpack.c.b16 %v1804, %v1802
    %v2103 = vpack.c.b16 %v1805, %v1803
    %v2104 = vpack.c.b16 %v1808, %v1806
    %v2105 = vpack.c.b16 %v1809, %v1807
    %v2106 = vpack.c.b16 %v1812, %v1810
    %v2107 = vpack.c.b16 %v1813, %v1811
    %v2108 = vpack.c.b16 %v1816, %v1814
    %v2109 = vpack.c.b16 %v1817, %v1815
    %v2110 = vpack.c.b16 %v1820, %v1818
    %v2111 = vpack.c.b16 %v1821, %v1819
    %v2112 = vpack.c.b16 %v1824, %v1822
    %v2113 = vpack.c.b16 %v1825, %v1823
    %v2114 = vpack.c.b16 %v1828, %v1826
    %v2115 = vpack.c.b16 %v1829, %v1827
    %v2116 = vpack.c.b16 %v1832, %v1830
    %v2117 = vpack.c.b16 %v1833, %v1831
    %v2118 = vpack.c.b16 %v1836, %v1834
    %v2119 = vpack.c.b16 %v1837, %v1835
    %v2120 = vpack.c.b16 %v1840, %v1838
    %v2121 = vpack.c.b16 %v1841, %v1839
    %v2122 = vpack.c.b16 %v1844, %v1842
    %v2123 = vpack.c.b16 %v1845, %v1843
    %v2124 = vpack.c.b16 %v1848, %v1846
    %v2125 = vpack.c.b16 %v1849, %v1847
    %v2126 = vpack.c.b16 %v1852, %v1850
    %v2127 = vpack.c.b16 %v1853, %v1851
    %v2128 = vpack.c.b16 %v1856, %v1854
    %v2129 = vpack.c.b16 %v1857, %v1855
    %v2130 = vpack.c.b16 %v1860, %v1858
    %v2131 = vpack.c.b16 %v1861, %v1859
    %v2132 = vpack.c.b16 %v1864, %v1862
    %v2133 = vpack.c.b16 %v1865, %v1863
    %v2134 = vpack.c.b16 %v1868, %v1866
    %v2135 = vpack.c.b16 %v1869, %v1867
    %v2136 = vpack.c.b16 %v1872, %v1870
    %v2137 = vpack.c.b16 %v1873, %v1871
    %v2138 = vpack.c.b16 %v1876, %v1874
    %v2139 = vpack.c.b16 %v1877, %v1875
    %v2140 = vpack.c.b16 %v1880, %v1878
    %v2141 = vpack.c.b16 %v1881, %v1879
    %v2142 = vpack.c.b16 %v1884, %v1882
    %v2143 = vpack.c.b16 %v1885, %v1883
    %v2144 = vpack.c.b16 %v1888, %v1886
    %v2145 = vpack.c.b16 %v1889, %v1887
    %2402 = vmatpush.bf16.msra.mxu0 %v1904
    %2403 = vmatpush.bf16.msra.mxu0 %v1902
    %2404 = vmatpush.bf16.msra.mxu0 %v1900
    %2405 = vmatpush.bf16.msra.mxu0 %v1898
    %2406 = vmatpush.bf16.msra.mxu0 %v1896
    %2407 = vmatpush.bf16.msra.mxu0 %v1894
    %2408 = vmatpush.bf16.msra.mxu0 %v1892
    %2409 = vmatpush.bf16.msra.mxu0 %v1890
    %2410 = vmatmul.bf16.gmra.mxu0 %v850
    %v2411 = vpop.f32.mrf.mxu0
    %v2412 = vadd.f32 0.0, %v2411
    %v2413 = vpop.f32.mrf.mxu0
    %2414 = vdwg.mxu0
    %2415 = vmatpush.bf16.msra.mxu0 %v1920
    %2416 = vmatpush.bf16.msra.mxu0 %v1918
    %2417 = vmatpush.bf16.msra.mxu0 %v1916
    %2418 = vmatpush.bf16.msra.mxu0 %v1914
    %2419 = vmatpush.bf16.msra.mxu0 %v1912
    %2420 = vmatpush.bf16.msra.mxu0 %v1910
    %2421 = vmatpush.bf16.msra.mxu0 %v1908
    %2422 = vmatpush.bf16.msra.mxu0 %v1906
    %2423 = vmatmul.bf16.gmra.mxu0 %v851
    %v2424 = vpop.f32.mrf.mxu0
    %v2425 = vadd.f32 %v2412, %v2424
    %v2426 = vpop.f32.mrf.mxu0
    %2427 = vdwg.mxu0
    %2428 = vmatpush.bf16.msra.mxu0 %v1936
    %2429 = vmatpush.bf16.msra.mxu0 %v1934
    %2430 = vmatpush.bf16.msra.mxu0 %v1932
    %2431 = vmatpush.bf16.msra.mxu0 %v1930
    %2432 = vmatpush.bf16.msra.mxu0 %v1928
    %2433 = vmatpush.bf16.msra.mxu0 %v1926
    %2434 = vmatpush.bf16.msra.mxu0 %v1924
    %2435 = vmatpush.bf16.msra.mxu0 %v1922
    %2436 = vmatmul.bf16.gmra.mxu0 %v852
    %v2437 = vpop.f32.mrf.mxu0
    %v2438 = vadd.f32 %v2425, %v2437
    %v2439 = vpop.f32.mrf.mxu0
    %2440 = vdwg.mxu0
    %2441 = vmatpush.bf16.msra.mxu0 %v1952
    %2442 = vmatpush.bf16.msra.mxu0 %v1950
    %2443 = vmatpush.bf16.msra.mxu0 %v1948
    %2444 = vmatpush.bf16.msra.mxu0 %v1946
    %2445 = vmatpush.bf16.msra.mxu0 %v1944
    %2446 = vmatpush.bf16.msra.mxu0 %v1942
    %2447 = vmatpush.bf16.msra.mxu0 %v1940
    %2448 = vmatpush.bf16.msra.mxu0 %v1938
    %2449 = vmatmul.bf16.gmra.mxu0 %v853
    %v2450 = vpop.f32.mrf.mxu0
    %v2451 = vadd.f32 %v2438, %v2450
    %v2452 = vpop.f32.mrf.mxu0
    %2453 = vdwg.mxu0
    %2454 = vmatpush.bf16.msra.mxu0 %v1968
    %2455 = vmatpush.bf16.msra.mxu0 %v1966
    %2456 = vmatpush.bf16.msra.mxu0 %v1964
    %2457 = vmatpush.bf16.msra.mxu0 %v1962
    %2458 = vmatpush.bf16.msra.mxu0 %v1960
    %2459 = vmatpush.bf16.msra.mxu0 %v1958
    %2460 = vmatpush.bf16.msra.mxu0 %v1956
    %2461 = vmatpush.bf16.msra.mxu0 %v1954
    %2462 = vmatmul.bf16.gmra.mxu0 %v854
    %v2463 = vpop.f32.mrf.mxu0
    %v2464 = vadd.f32 %v2451, %v2463
    %v2465 = vpop.f32.mrf.mxu0
    %2466 = vdwg.mxu0
    %2467 = vmatpush.bf16.msra.mxu0 %v1984
    %2468 = vmatpush.bf16.msra.mxu0 %v1982
    %2469 = vmatpush.bf16.msra.mxu0 %v1980
    %2470 = vmatpush.bf16.msra.mxu0 %v1978
    %2471 = vmatpush.bf16.msra.mxu0 %v1976
    %2472 = vmatpush.bf16.msra.mxu0 %v1974
    %2473 = vmatpush.bf16.msra.mxu0 %v1972
    %2474 = vmatpush.bf16.msra.mxu0 %v1970
    %2475 = vmatmul.bf16.gmra.mxu0 %v855
    %v2476 = vpop.f32.mrf.mxu0
    %v2477 = vadd.f32 %v2464, %v2476
    %v2478 = vpop.f32.mrf.mxu0
    %2479 = vdwg.mxu0
    %2480 = vmatpush.bf16.msra.mxu0 %v2000
    %2481 = vmatpush.bf16.msra.mxu0 %v1998
    %2482 = vmatpush.bf16.msra.mxu0 %v1996
    %2483 = vmatpush.bf16.msra.mxu0 %v1994
    %2484 = vmatpush.bf16.msra.mxu0 %v1992
    %2485 = vmatpush.bf16.msra.mxu0 %v1990
    %2486 = vmatpush.bf16.msra.mxu0 %v1988
    %2487 = vmatpush.bf16.msra.mxu0 %v1986
    %2488 = vmatmul.bf16.gmra.mxu0 %v856
    %v2489 = vpop.f32.mrf.mxu0
    %v2490 = vadd.f32 %v2477, %v2489
    %v2491 = vpop.f32.mrf.mxu0
    %2492 = vdwg.mxu0
    %2493 = vmatpush.bf16.msra.mxu0 %v2016
    %2494 = vmatpush.bf16.msra.mxu0 %v2014
    %2495 = vmatpush.bf16.msra.mxu0 %v2012
    %2496 = vmatpush.bf16.msra.mxu0 %v2010
    %2497 = vmatpush.bf16.msra.mxu0 %v2008
    %2498 = vmatpush.bf16.msra.mxu0 %v2006
    %2499 = vmatpush.bf16.msra.mxu0 %v2004
    %2500 = vmatpush.bf16.msra.mxu0 %v2002
    %2501 = vmatmul.bf16.gmra.mxu0 %v857
    %v2502 = vpop.f32.mrf.mxu0
    %v2503 = vadd.f32 %v2490, %v2502
    %v2504 = vpop.f32.mrf.mxu0
    %2505 = vdwg.mxu0
    %2506 = vmatpush.bf16.msra.mxu0 %v2032
    %2507 = vmatpush.bf16.msra.mxu0 %v2030
    %2508 = vmatpush.bf16.msra.mxu0 %v2028
    %2509 = vmatpush.bf16.msra.mxu0 %v2026
    %2510 = vmatpush.bf16.msra.mxu0 %v2024
    %2511 = vmatpush.bf16.msra.mxu0 %v2022
    %2512 = vmatpush.bf16.msra.mxu0 %v2020
    %2513 = vmatpush.bf16.msra.mxu0 %v2018
    %2514 = vmatmul.bf16.gmra.mxu0 %v858
    %v2515 = vpop.f32.mrf.mxu0
    %v2516 = vadd.f32 %v2503, %v2515
    %v2517 = vpop.f32.mrf.mxu0
    %2518 = vdwg.mxu0
    %2519 = vmatpush.bf16.msra.mxu0 %v2048
    %2520 = vmatpush.bf16.msra.mxu0 %v2046
    %2521 = vmatpush.bf16.msra.mxu0 %v2044
    %2522 = vmatpush.bf16.msra.mxu0 %v2042
    %2523 = vmatpush.bf16.msra.mxu0 %v2040
    %2524 = vmatpush.bf16.msra.mxu0 %v2038
    %2525 = vmatpush.bf16.msra.mxu0 %v2036
    %2526 = vmatpush.bf16.msra.mxu0 %v2034
    %2527 = vmatmul.bf16.gmra.mxu0 %v859
    %v2528 = vpop.f32.mrf.mxu0
    %v2529 = vadd.f32 %v2516, %v2528
    %v2530 = vpop.f32.mrf.mxu0
    %2531 = vdwg.mxu0
    %2532 = vmatpush.bf16.msra.mxu0 %v2064
    %2533 = vmatpush.bf16.msra.mxu0 %v2062
    %2534 = vmatpush.bf16.msra.mxu0 %v2060
    %2535 = vmatpush.bf16.msra.mxu0 %v2058
    %2536 = vmatpush.bf16.msra.mxu0 %v2056
    %2537 = vmatpush.bf16.msra.mxu0 %v2054
    %2538 = vmatpush.bf16.msra.mxu0 %v2052
    %2539 = vmatpush.bf16.msra.mxu0 %v2050
    %2540 = vmatmul.bf16.gmra.mxu0 %v860
    %v2541 = vpop.f32.mrf.mxu0
    %v2542 = vadd.f32 %v2529, %v2541
    %v2543 = vpop.f32.mrf.mxu0
    %2544 = vdwg.mxu0
    %2545 = vmatpush.bf16.msra.mxu0 %v2080
    %2546 = vmatpush.bf16.msra.mxu0 %v2078
    %2547 = vmatpush.bf16.msra.mxu0 %v2076
    %2548 = vmatpush.bf16.msra.mxu0 %v2074
    %2549 = vmatpush.bf16.msra.mxu0 %v2072
    %2550 = vmatpush.bf16.msra.mxu0 %v2070
    %2551 = vmatpush.bf16.msra.mxu0 %v2068
    %2552 = vmatpush.bf16.msra.mxu0 %v2066
    %2553 = vmatmul.bf16.gmra.mxu0 %v861
    %v2554 = vpop.f32.mrf.mxu0
    %v2555 = vadd.f32 %v2542, %v2554
    %v2556 = vpop.f32.mrf.mxu0
    %2557 = vdwg.mxu0
    %2558 = vmatpush.bf16.msra.mxu0 %v2096
    %2559 = vmatpush.bf16.msra.mxu0 %v2094
    %2560 = vmatpush.bf16.msra.mxu0 %v2092
    %2561 = vmatpush.bf16.msra.mxu0 %v2090
    %2562 = vmatpush.bf16.msra.mxu0 %v2088
    %2563 = vmatpush.bf16.msra.mxu0 %v2086
    %2564 = vmatpush.bf16.msra.mxu0 %v2084
    %2565 = vmatpush.bf16.msra.mxu0 %v2082
    %2566 = vmatmul.bf16.gmra.mxu0 %v862
    %v2567 = vpop.f32.mrf.mxu0
    %v2568 = vadd.f32 %v2555, %v2567
    %v2569 = vpop.f32.mrf.mxu0
    %2570 = vdwg.mxu0
    %2571 = vmatpush.bf16.msra.mxu0 %v2112
    %2572 = vmatpush.bf16.msra.mxu0 %v2110
    %2573 = vmatpush.bf16.msra.mxu0 %v2108
    %2574 = vmatpush.bf16.msra.mxu0 %v2106
    %2575 = vmatpush.bf16.msra.mxu0 %v2104
    %2576 = vmatpush.bf16.msra.mxu0 %v2102
    %2577 = vmatpush.bf16.msra.mxu0 %v2100
    %2578 = vmatpush.bf16.msra.mxu0 %v2098
    %2579 = vmatmul.bf16.gmra.mxu0 %v863
    %v2580 = vpop.f32.mrf.mxu0
    %v2581 = vadd.f32 %v2568, %v2580
    %v2582 = vpop.f32.mrf.mxu0
    %2583 = vdwg.mxu0
    %2584 = vmatpush.bf16.msra.mxu0 %v2128
    %2585 = vmatpush.bf16.msra.mxu0 %v2126
    %2586 = vmatpush.bf16.msra.mxu0 %v2124
    %2587 = vmatpush.bf16.msra.mxu0 %v2122
    %2588 = vmatpush.bf16.msra.mxu0 %v2120
    %2589 = vmatpush.bf16.msra.mxu0 %v2118
    %2590 = vmatpush.bf16.msra.mxu0 %v2116
    %2591 = vmatpush.bf16.msra.mxu0 %v2114
    %2592 = vmatmul.bf16.gmra.mxu0 %v864
    %v2593 = vpop.f32.mrf.mxu0
    %v2594 = vadd.f32 %v2581, %v2593
    %v2595 = vpop.f32.mrf.mxu0
    %2596 = vdwg.mxu0
    %2597 = vmatpush.bf16.msra.mxu0 %v2144
    %2598 = vmatpush.bf16.msra.mxu0 %v2142
    %2599 = vmatpush.bf16.msra.mxu0 %v2140
    %2600 = vmatpush.bf16.msra.mxu0 %v2138
    %2601 = vmatpush.bf16.msra.mxu0 %v2136
    %2602 = vmatpush.bf16.msra.mxu0 %v2134
    %2603 = vmatpush.bf16.msra.mxu0 %v2132
    %2604 = vmatpush.bf16.msra.mxu0 %v2130
    %2605 = vmatmul.bf16.gmra.mxu0 %v865
    %v2606 = vpop.f32.mrf.mxu0
    %v2607 = vadd.f32 %v2594, %v2606
    %v2608 = vpop.f32.mrf.mxu0
    %2609 = vdwg.mxu0
    %2610 = vmatpush.bf16.msra.mxu0 %v1905
    %2611 = vmatpush.bf16.msra.mxu0 %v1903
    %2612 = vmatpush.bf16.msra.mxu0 %v1901
    %2613 = vmatpush.bf16.msra.mxu0 %v1899
    %2614 = vmatpush.bf16.msra.mxu0 %v1897
    %2615 = vmatpush.bf16.msra.mxu0 %v1895
    %2616 = vmatpush.bf16.msra.mxu0 %v1893
    %2617 = vmatpush.bf16.msra.mxu0 %v1891
    %2618 = vmatmul.bf16.gmra.mxu0 %v850
    %v2619 = vpop.f32.mrf.mxu0
    %v2620 = vadd.f32 0.0, %v2619
    %v2621 = vpop.f32.mrf.mxu0
    %2622 = vdwg.mxu0
    %2623 = vmatpush.bf16.msra.mxu0 %v1921
    %2624 = vmatpush.bf16.msra.mxu0 %v1919
    %2625 = vmatpush.bf16.msra.mxu0 %v1917
    %2626 = vmatpush.bf16.msra.mxu0 %v1915
    %2627 = vmatpush.bf16.msra.mxu0 %v1913
    %2628 = vmatpush.bf16.msra.mxu0 %v1911
    %2629 = vmatpush.bf16.msra.mxu0 %v1909
    %2630 = vmatpush.bf16.msra.mxu0 %v1907
    %2631 = vmatmul.bf16.gmra.mxu0 %v851
    %v2632 = vpop.f32.mrf.mxu0
    %v2633 = vadd.f32 %v2620, %v2632
    %v2634 = vpop.f32.mrf.mxu0
    %2635 = vdwg.mxu0
    %2636 = vmatpush.bf16.msra.mxu0 %v1937
    %2637 = vmatpush.bf16.msra.mxu0 %v1935
    %2638 = vmatpush.bf16.msra.mxu0 %v1933
    %2639 = vmatpush.bf16.msra.mxu0 %v1931
    %2640 = vmatpush.bf16.msra.mxu0 %v1929
    %2641 = vmatpush.bf16.msra.mxu0 %v1927
    %2642 = vmatpush.bf16.msra.mxu0 %v1925
    %2643 = vmatpush.bf16.msra.mxu0 %v1923
    %2644 = vmatmul.bf16.gmra.mxu0 %v852
    %v2645 = vpop.f32.mrf.mxu0
    %v2646 = vadd.f32 %v2633, %v2645
    %v2647 = vpop.f32.mrf.mxu0
    %2648 = vdwg.mxu0
    %2649 = vmatpush.bf16.msra.mxu0 %v1953
    %2650 = vmatpush.bf16.msra.mxu0 %v1951
    %2651 = vmatpush.bf16.msra.mxu0 %v1949
    %2652 = vmatpush.bf16.msra.mxu0 %v1947
    %2653 = vmatpush.bf16.msra.mxu0 %v1945
    %2654 = vmatpush.bf16.msra.mxu0 %v1943
    %2655 = vmatpush.bf16.msra.mxu0 %v1941
    %2656 = vmatpush.bf16.msra.mxu0 %v1939
    %2657 = vmatmul.bf16.gmra.mxu0 %v853
    %v2658 = vpop.f32.mrf.mxu0
    %v2659 = vadd.f32 %v2646, %v2658
    %v2660 = vpop.f32.mrf.mxu0
    %2661 = vdwg.mxu0
    %2662 = vmatpush.bf16.msra.mxu0 %v1969
    %2663 = vmatpush.bf16.msra.mxu0 %v1967
    %2664 = vmatpush.bf16.msra.mxu0 %v1965
    %2665 = vmatpush.bf16.msra.mxu0 %v1963
    %2666 = vmatpush.bf16.msra.mxu0 %v1961
    %2667 = vmatpush.bf16.msra.mxu0 %v1959
    %2668 = vmatpush.bf16.msra.mxu0 %v1957
    %2669 = vmatpush.bf16.msra.mxu0 %v1955
    %2670 = vmatmul.bf16.gmra.mxu0 %v854
    %v2671 = vpop.f32.mrf.mxu0
    %v2672 = vadd.f32 %v2659, %v2671
    %v2673 = vpop.f32.mrf.mxu0
    %2674 = vdwg.mxu0
    %2675 = vmatpush.bf16.msra.mxu0 %v1985
    %2676 = vmatpush.bf16.msra.mxu0 %v1983
    %2677 = vmatpush.bf16.msra.mxu0 %v1981
    %2678 = vmatpush.bf16.msra.mxu0 %v1979
    %2679 = vmatpush.bf16.msra.mxu0 %v1977
    %2680 = vmatpush.bf16.msra.mxu0 %v1975
    %2681 = vmatpush.bf16.msra.mxu0 %v1973
    %2682 = vmatpush.bf16.msra.mxu0 %v1971
    %2683 = vmatmul.bf16.gmra.mxu0 %v855
    %v2684 = vpop.f32.mrf.mxu0
    %v2685 = vadd.f32 %v2672, %v2684
    %v2686 = vpop.f32.mrf.mxu0
    %2687 = vdwg.mxu0
    %2688 = vmatpush.bf16.msra.mxu0 %v2001
    %2689 = vmatpush.bf16.msra.mxu0 %v1999
    %2690 = vmatpush.bf16.msra.mxu0 %v1997
    %2691 = vmatpush.bf16.msra.mxu0 %v1995
    %2692 = vmatpush.bf16.msra.mxu0 %v1993
    %2693 = vmatpush.bf16.msra.mxu0 %v1991
    %2694 = vmatpush.bf16.msra.mxu0 %v1989
    %2695 = vmatpush.bf16.msra.mxu0 %v1987
    %2696 = vmatmul.bf16.gmra.mxu0 %v856
    %v2697 = vpop.f32.mrf.mxu0
    %v2698 = vadd.f32 %v2685, %v2697
    %v2699 = vpop.f32.mrf.mxu0
    %2700 = vdwg.mxu0
    %2701 = vmatpush.bf16.msra.mxu0 %v2017
    %2702 = vmatpush.bf16.msra.mxu0 %v2015
    %2703 = vmatpush.bf16.msra.mxu0 %v2013
    %2704 = vmatpush.bf16.msra.mxu0 %v2011
    %2705 = vmatpush.bf16.msra.mxu0 %v2009
    %2706 = vmatpush.bf16.msra.mxu0 %v2007
    %2707 = vmatpush.bf16.msra.mxu0 %v2005
    %2708 = vmatpush.bf16.msra.mxu0 %v2003
    %2709 = vmatmul.bf16.gmra.mxu0 %v857
    %v2710 = vpop.f32.mrf.mxu0
    %v2711 = vadd.f32 %v2698, %v2710
    %v2712 = vpop.f32.mrf.mxu0
    %2713 = vdwg.mxu0
    %2714 = vmatpush.bf16.msra.mxu0 %v2033
    %2715 = vmatpush.bf16.msra.mxu0 %v2031
    %2716 = vmatpush.bf16.msra.mxu0 %v2029
    %2717 = vmatpush.bf16.msra.mxu0 %v2027
    %2718 = vmatpush.bf16.msra.mxu0 %v2025
    %2719 = vmatpush.bf16.msra.mxu0 %v2023
    %2720 = vmatpush.bf16.msra.mxu0 %v2021
    %2721 = vmatpush.bf16.msra.mxu0 %v2019
    %2722 = vmatmul.bf16.gmra.mxu0 %v858
    %v2723 = vpop.f32.mrf.mxu0
    %v2724 = vadd.f32 %v2711, %v2723
    %v2725 = vpop.f32.mrf.mxu0
    %2726 = vdwg.mxu0
    %2727 = vmatpush.bf16.msra.mxu0 %v2049
    %2728 = vmatpush.bf16.msra.mxu0 %v2047
    %2729 = vmatpush.bf16.msra.mxu0 %v2045
    %2730 = vmatpush.bf16.msra.mxu0 %v2043
    %2731 = vmatpush.bf16.msra.mxu0 %v2041
    %2732 = vmatpush.bf16.msra.mxu0 %v2039
    %2733 = vmatpush.bf16.msra.mxu0 %v2037
    %2734 = vmatpush.bf16.msra.mxu0 %v2035
    %2735 = vmatmul.bf16.gmra.mxu0 %v859
    %v2736 = vpop.f32.mrf.mxu0
    %v2737 = vadd.f32 %v2724, %v2736
    %v2738 = vpop.f32.mrf.mxu0
    %2739 = vdwg.mxu0
    %2740 = vmatpush.bf16.msra.mxu0 %v2065
    %2741 = vmatpush.bf16.msra.mxu0 %v2063
    %2742 = vmatpush.bf16.msra.mxu0 %v2061
    %2743 = vmatpush.bf16.msra.mxu0 %v2059
    %2744 = vmatpush.bf16.msra.mxu0 %v2057
    %2745 = vmatpush.bf16.msra.mxu0 %v2055
    %2746 = vmatpush.bf16.msra.mxu0 %v2053
    %2747 = vmatpush.bf16.msra.mxu0 %v2051
    %2748 = vmatmul.bf16.gmra.mxu0 %v860
    %v2749 = vpop.f32.mrf.mxu0
    %v2750 = vadd.f32 %v2737, %v2749
    %v2751 = vpop.f32.mrf.mxu0
    %2752 = vdwg.mxu0
    %2753 = vmatpush.bf16.msra.mxu0 %v2081
    %2754 = vmatpush.bf16.msra.mxu0 %v2079
    %2755 = vmatpush.bf16.msra.mxu0 %v2077
    %2756 = vmatpush.bf16.msra.mxu0 %v2075
    %2757 = vmatpush.bf16.msra.mxu0 %v2073
    %2758 = vmatpush.bf16.msra.mxu0 %v2071
    %2759 = vmatpush.bf16.msra.mxu0 %v2069
    %2760 = vmatpush.bf16.msra.mxu0 %v2067
    %2761 = vmatmul.bf16.gmra.mxu0 %v861
    %v2762 = vpop.f32.mrf.mxu0
    %v2763 = vadd.f32 %v2750, %v2762
    %v2764 = vpop.f32.mrf.mxu0
    %2765 = vdwg.mxu0
    %2766 = vmatpush.bf16.msra.mxu0 %v2097
    %2767 = vmatpush.bf16.msra.mxu0 %v2095
    %2768 = vmatpush.bf16.msra.mxu0 %v2093
    %2769 = vmatpush.bf16.msra.mxu0 %v2091
    %2770 = vmatpush.bf16.msra.mxu0 %v2089
    %2771 = vmatpush.bf16.msra.mxu0 %v2087
    %2772 = vmatpush.bf16.msra.mxu0 %v2085
    %2773 = vmatpush.bf16.msra.mxu0 %v2083
    %2774 = vmatmul.bf16.gmra.mxu0 %v862
    %v2775 = vpop.f32.mrf.mxu0
    %v2776 = vadd.f32 %v2763, %v2775
    %v2777 = vpop.f32.mrf.mxu0
    %2778 = vdwg.mxu0
    %2779 = vmatpush.bf16.msra.mxu0 %v2113
    %2780 = vmatpush.bf16.msra.mxu0 %v2111
    %2781 = vmatpush.bf16.msra.mxu0 %v2109
    %2782 = vmatpush.bf16.msra.mxu0 %v2107
    %2783 = vmatpush.bf16.msra.mxu0 %v2105
    %2784 = vmatpush.bf16.msra.mxu0 %v2103
    %2785 = vmatpush.bf16.msra.mxu0 %v2101
    %2786 = vmatpush.bf16.msra.mxu0 %v2099
    %2787 = vmatmul.bf16.gmra.mxu0 %v863
    %v2788 = vpop.f32.mrf.mxu0
    %v2789 = vadd.f32 %v2776, %v2788
    %v2790 = vpop.f32.mrf.mxu0
    %2791 = vdwg.mxu0
    %2792 = vmatpush.bf16.msra.mxu0 %v2129
    %2793 = vmatpush.bf16.msra.mxu0 %v2127
    %2794 = vmatpush.bf16.msra.mxu0 %v2125
    %2795 = vmatpush.bf16.msra.mxu0 %v2123
    %2796 = vmatpush.bf16.msra.mxu0 %v2121
    %2797 = vmatpush.bf16.msra.mxu0 %v2119
    %2798 = vmatpush.bf16.msra.mxu0 %v2117
    %2799 = vmatpush.bf16.msra.mxu0 %v2115
    %2800 = vmatmul.bf16.gmra.mxu0 %v864
    %v2801 = vpop.f32.mrf.mxu0
    %v2802 = vadd.f32 %v2789, %v2801
    %v2803 = vpop.f32.mrf.mxu0
    %2804 = vdwg.mxu0
    %2805 = vmatpush.bf16.msra.mxu0 %v2145
    %2806 = vmatpush.bf16.msra.mxu0 %v2143
    %2807 = vmatpush.bf16.msra.mxu0 %v2141
    %2808 = vmatpush.bf16.msra.mxu0 %v2139
    %2809 = vmatpush.bf16.msra.mxu0 %v2137
    %2810 = vmatpush.bf16.msra.mxu0 %v2135
    %2811 = vmatpush.bf16.msra.mxu0 %v2133
    %2812 = vmatpush.bf16.msra.mxu0 %v2131
    %2813 = vmatmul.bf16.gmra.mxu0 %v865
    %v2814 = vpop.f32.mrf.mxu0
    %v2815 = vadd.f32 %v2802, %v2814
    %v2816 = vpop.f32.mrf.mxu0
    %2817 = vdwg.mxu0
    %v2818 = vld [vmem:[%s4] ss:$4 sm:$0x3]
    %v2820 = vperm.slane %v2818, 0
    %v2821 = vperm.slane %v2818, 1
    %v2824 = vmul.f32 %v2607, %v2820
    %v2825 = vmul.f32 %v2815, %v2821
    %s2826 = scalar_lea.vmem %s4, 1
    %v2827 = vld [vmem:[%s2826] ss:$4 sm:$0x3]
    %v2829 = vperm.slane %v2827, 0
    %v2830 = vperm.slane %v2827, 1
    %v2833 = vadd.f32 %v2824, %v2829
    %v2834 = vadd.f32 %v2825, %v2830
    %v2835 = vmax.f32 %v2833, 0.0
    %v2836 = vmax.f32 %v2834, 0.0
    %v2837 = vpack.c.bf16 %v2835, %v2835
    %v2838 = vpack.c.bf16 %v2836, %v2836
    %v2839 = vld [vmem:[%s5] sm:$0xf]
    %v2840 = vld [vmem:[%s5 + $0x4] sm:$0xf]
    %v2841 = vld [vmem:[%s5 + $0x8] sm:$0xf]
    %v2842 = vld [vmem:[%s5 + $0xc] sm:$0xf]
    %v2843 = vld [vmem:[%s5 + $0x10] sm:$0xf]
    %v2844 = vld [vmem:[%s5 + $0x14] sm:$0xf]
    %v2845 = vld [vmem:[%s5 + $0x18] sm:$0xf]
    %v2846 = vld [vmem:[%s5 + $0x1c] sm:$0xf]
    %v2847 = vld [vmem:[%s5 + $0x20] sm:$0xf]
    %v2848 = vld [vmem:[%s5 + $0x24] sm:$0xf]
    %v2849 = vld [vmem:[%s5 + $0x28] sm:$0xf]
    %v2850 = vld [vmem:[%s5 + $0x2c] sm:$0xf]
    %v2851 = vld [vmem:[%s5 + $0x30] sm:$0xf]
    %v2852 = vld [vmem:[%s5 + $0x34] sm:$0xf]
    %v2853 = vld [vmem:[%s5 + $0x38] sm:$0xf]
    %v2854 = vld [vmem:[%s5 + $0x3c] sm:$0xf]
    %v2855 = vld [vmem:[%s5 + $0x40] sm:$0xf]
    %v2856 = vld [vmem:[%s5 + $0x44] sm:$0xf]
    %v2857 = vld [vmem:[%s5 + $0x48] sm:$0xf]
    %v2858 = vld [vmem:[%s5 + $0x4c] sm:$0xf]
    %v2859 = vld [vmem:[%s5 + $0x50] sm:$0xf]
    %v2860 = vld [vmem:[%s5 + $0x54] sm:$0xf]
    %v2861 = vld [vmem:[%s5 + $0x58] sm:$0xf]
    %v2862 = vld [vmem:[%s5 + $0x5c] sm:$0xf]
    %v2863 = vld [vmem:[%s5 + $0x60] sm:$0xf]
    %v2864 = vld [vmem:[%s5 + $0x64] sm:$0xf]
    %v2865 = vld [vmem:[%s5 + $0x68] sm:$0xf]
    %v2866 = vld [vmem:[%s5 + $0x6c] sm:$0xf]
    %v2867 = vld [vmem:[%s5 + $0x70] sm:$0xf]
    %v2868 = vld [vmem:[%s5 + $0x74] sm:$0xf]
    %v2869 = vld [vmem:[%s5 + $0x78] sm:$0xf]
    %v2870 = vld [vmem:[%s5 + $0x7c] sm:$0xf]
    %v2871 = vld [vmem:[%s4 + $0x2] sm:$0x1]
    %v2872 = vperm.slane %v2871, 0
    %v2905 = vunpack.c.l.b16 %v2839
    %v2906 = vunpack.c.l.b16 %v2840
    %v2907 = vunpack.c.l.b16 %v2841
    %v2908 = vunpack.c.l.b16 %v2842
    %v2909 = vunpack.c.l.b16 %v2843
    %v2910 = vunpack.c.l.b16 %v2844
    %v2911 = vunpack.c.l.b16 %v2845
    %v2912 = vunpack.c.l.b16 %v2846
    %v2913 = vunpack.c.l.b16 %v2847
    %v2914 = vunpack.c.l.b16 %v2848
    %v2915 = vunpack.c.l.b16 %v2849
    %v2916 = vunpack.c.l.b16 %v2850
    %v2917 = vunpack.c.l.b16 %v2851
    %v2918 = vunpack.c.l.b16 %v2852
    %v2919 = vunpack.c.l.b16 %v2853
    %v2920 = vunpack.c.l.b16 %v2854
    %v2921 = vunpack.c.l.b16 %v2855
    %v2922 = vunpack.c.l.b16 %v2856
    %v2923 = vunpack.c.l.b16 %v2857
    %v2924 = vunpack.c.l.b16 %v2858
    %v2925 = vunpack.c.l.b16 %v2859
    %v2926 = vunpack.c.l.b16 %v2860
    %v2927 = vunpack.c.l.b16 %v2861
    %v2928 = vunpack.c.l.b16 %v2862
    %v2929 = vunpack.c.l.b16 %v2863
    %v2930 = vunpack.c.l.b16 %v2864
    %v2931 = vunpack.c.l.b16 %v2865
    %v2932 = vunpack.c.l.b16 %v2866
    %v2933 = vunpack.c.l.b16 %v2867
    %v2934 = vunpack.c.l.b16 %v2868
    %v2935 = vunpack.c.l.b16 %v2869
    %v2936 = vunpack.c.l.b16 %v2870
    %v2937 = vpack.c.b16 %v2906, %v2905
    %v2938 = vpack.c.b16 %v2908, %v2907
    %v2939 = vpack.c.b16 %v2910, %v2909
    %v2940 = vpack.c.b16 %v2912, %v2911
    %v2941 = vpack.c.b16 %v2914, %v2913
    %v2942 = vpack.c.b16 %v2916, %v2915
    %v2943 = vpack.c.b16 %v2918, %v2917
    %v2944 = vpack.c.b16 %v2920, %v2919
    %v2945 = vpack.c.b16 %v2922, %v2921
    %v2946 = vpack.c.b16 %v2924, %v2923
    %v2947 = vpack.c.b16 %v2926, %v2925
    %v2948 = vpack.c.b16 %v2928, %v2927
    %v2949 = vpack.c.b16 %v2930, %v2929
    %v2950 = vpack.c.b16 %v2932, %v2931
    %v2951 = vpack.c.b16 %v2934, %v2933
    %v2952 = vpack.c.b16 %v2936, %v2935
    %2969 = vmatpush.bf16.msra.mxu0 %v2944
    %2970 = vmatpush.bf16.msra.mxu0 %v2943
    %2971 = vmatpush.bf16.msra.mxu0 %v2942
    %2972 = vmatpush.bf16.msra.mxu0 %v2941
    %2973 = vmatpush.bf16.msra.mxu0 %v2940
    %2974 = vmatpush.bf16.msra.mxu0 %v2939
    %2975 = vmatpush.bf16.msra.mxu0 %v2938
    %2976 = vmatpush.bf16.msra.mxu0 %v2937
    %2977 = vmatmul.bf16.gmra.mxu0 %v2837
    %v2978 = vpop.f32.mrf.mxu0
    %v2979 = vadd.f32 %v2872, %v2978
    %v2980 = vpop.f32.mrf.mxu0
    %2981 = vdwg.mxu0
    %2982 = vmatpush.bf16.msra.mxu0 %v2952
    %2983 = vmatpush.bf16.msra.mxu0 %v2951
    %2984 = vmatpush.bf16.msra.mxu0 %v2950
    %2985 = vmatpush.bf16.msra.mxu0 %v2949
    %2986 = vmatpush.bf16.msra.mxu0 %v2948
    %2987 = vmatpush.bf16.msra.mxu0 %v2947
    %2988 = vmatpush.bf16.msra.mxu0 %v2946
    %2989 = vmatpush.bf16.msra.mxu0 %v2945
    %2990 = vmatmul.bf16.gmra.mxu0 %v2838
    %v2991 = vpop.f32.mrf.mxu0
    %v2992 = vadd.f32 %v2979, %v2991
    %v2993 = vpop.f32.mrf.mxu0
    %2994 = vdwg.mxu0
    %v2995 = vxor.u32 %v2992, 2147483648
    %v2996 = vmul.f32 %v2995, 1.442695
    %v2997 = vpow.pop %v2996
    %v2998 = vadd.f32 %v2997, 1.0
    %v2999 = vrcp.pop %v2998
    %v3000 = vmul.f32 %v2998, %v2999
    %v3001 = vsub.f32 1.0, %v3000
    %v3002 = vmul.f32 %v2999, %v3001
    %v3003 = vadd.f32 %v2999, %v3002
    %vm3004 = vweird.f32 %v2998
    %vm3005 = vweird.f32 %v2999
    %vm3006 = vmor %vm3004, %vm3005
    %v3007 = vsel %vm3006, %v2999, %v3003
    %v3008 = vand.u32 2147483647, %v2998
    %vm3009 = vcmp.eq.f32.partialorder %v3008, 8.507059e+37
    %v3010 = vand.u32 %v2998, 2147483648
    %v3011 = vor.u32 1.1754944e-38, %v3010
    %v3012 = vsel %vm3009, %v3011, %v3007
    %v3013 = vmul.f32 1.0, %v3012
    %3014 = vst [vmem:[#allocation6] sm:$0xff] %v3013
    // Predicated region
    $region30: #{tpu_custom_call.1} parent=1 // pred_check
      _
    $region31: #{tpu_custom_call.1} parent=1 // pred_check_branch
      %3016 = sbr.rel (0) target = $region33
    $region32: #{tpu_custom_call.1} parent=1 // pred_region
      %3018 = vsyncadd [#allocation5], 0
      %s3020 = sshll.u32 [#allocation6], 4
      %s3021 = int_to_ptr.vmem [resolvable:$true] %s3020
      %s3022 = sshll.u32 %s6, 4
      %s3023 = int_to_ptr.hbm [resolvable:$true] %s3022
      %3025 = dma.vmem_to_hbm [thread:$0]  %s3021, 128, %s3023, [#allocation5]
    $region33: #{tpu_custom_call.1} parent=1 // pred_fallthru
      _
    // Predicated region
    $region34: #{tpu_custom_call.1} parent=1 // pred_check
      _
    $region35: #{tpu_custom_call.1} parent=1 // pred_check_branch
      %3027 = sbr.rel (0) target = $region37
    $region36: #{tpu_custom_call.1} parent=1 // pred_region
      %3029 = dma.done [#allocation5], 128
    $region37: #{tpu_custom_call.1} parent=1 // pred_fallthru
      _
    %3030 = vsyncpa [#allocation4], 1
    %3031 = vsyncpa [#allocation5], 1

</llo_original>
